<compile_context>
chip_gen: v7x
topology: tpu7x:2x2x1
jax: 0.10.0
libtpu: 0.0.40
codegen_flags: <defaults>
</compile_context>

<pallas_src>
import functools
import math

import jax
import jax.numpy as jnp
from jax.experimental import pallas as pl
from jax.experimental.pallas import tpu as pltpu


def _attn_flash_kernel(xq_ref, xkv_ref, a_ref, b_ref,
                       wq_ref, bq_ref, wkv_ref, bkv_ref, wp_ref, bp_ref,
                       out_ref,
                       q_scr, m_scr, l_scr, acc_scr,
                       *, c):
    """One (batch, q_tile, kv_tile) grid step: GN-affine + QKV + flash attn + proj + residual."""
    ki = pl.program_id(2)
    nk = pl.num_programs(2)

    a = a_ref[0]       # (1, C)  gamma * inv_std                (per batch, f32)
    sh = b_ref[0]      # (1, C)  beta - mean * gamma * inv_std  (per batch, f32)

    @pl.when(ki == 0)
    def _init():
        xq = xq_ref[0]                                            # (Tq, C) f32
        hq = (xq * a + sh).astype(jnp.bfloat16)
        # 1/sqrt(C) scale is already folded into wq / bq in the wrapper.
        q = jnp.dot(hq, wq_ref[...],
                    preferred_element_type=jnp.float32) + bq_ref[...]
        q_scr[...] = q.astype(jnp.bfloat16)
        m_scr[...] = jnp.full(m_scr.shape, -jnp.inf, dtype=m_scr.dtype)
        l_scr[...] = jnp.zeros(l_scr.shape, dtype=l_scr.dtype)
        acc_scr[...] = jnp.zeros(acc_scr.shape, dtype=acc_scr.dtype)

    # --- K/V projection for this KV tile (fused (C, 2C) matmul) ---------------
    xkv = xkv_ref[0]                                              # (Tk, C) f32
    hkv = (xkv * a + sh).astype(jnp.bfloat16)
    kv = jnp.dot(hkv, wkv_ref[...],
                 preferred_element_type=jnp.float32) + bkv_ref[...]
    k = kv[:, :c].astype(jnp.bfloat16)                            # (Tk, C)
    v = kv[:, c:].astype(jnp.bfloat16)                            # (Tk, C)

    # --- online-softmax attention update --------------------------------------
    # Contract the channel axis of q and k directly (no explicit transpose).
    s = jax.lax.dot_general(q_scr[...], k, (((1,), (1,)), ((), ())),
                            preferred_element_type=jnp.float32)   # (Tq, Tk)

    m_prev = m_scr[...]
    m_new = jnp.maximum(m_prev, jnp.max(s, axis=-1, keepdims=True))
    alpha = jnp.exp(m_prev - m_new)
    p = jnp.exp(s - m_new)
    l_scr[...] = alpha * l_scr[...] + jnp.sum(p, axis=-1, keepdims=True)
    acc_scr[...] = alpha * acc_scr[...] + jnp.dot(
        p.astype(jnp.bfloat16), v, preferred_element_type=jnp.float32)
    m_scr[...] = m_new

    @pl.when(ki == nk - 1)
    def _finish():
        o = acc_scr[...] * pl.reciprocal(l_scr[...], approx=True)  # (Tq, C) f32
        y = jnp.dot(o.astype(jnp.bfloat16), wp_ref[...],
                    preferred_element_type=jnp.float32) + bp_ref[...]
        out_ref[0] = xq_ref[0] + y                                 # residual in f32


def _pick_tile(n, target):
    """Largest tile <= target that divides n and is a multiple of 8, else n."""
    if n <= target:
        return n
    start = target - (target % 8)
    for t in range(start, 7, -8):
        if n % t == 0:
            return t
    return n


def _vmem_limit_bytes(tq, tk, c):
    f32, bf16 = 4, 2
    per_buf = (tq * c + tk * c + tq * c) * f32                 # xq, xkv, out blocks
    weights = (c * c + 2 * c * c + c * c) * bf16               # wq, wkv, wp
    small = 10 * c * f32                                       # a, b, biases
    scratch = tq * c * bf16 + tq * c * f32 + 2 * tq * 128 * f32
    est = 2 * (per_buf + weights + small) + scratch            # double-buffered
    return int(min(max(2 * est, 16 * 2 ** 20), 64 * 2 ** 20))  # cap for v7x (64 MiB)


def attn_block_pallas(x_nchw, params, *, num_groups=32, eps=1e-6,
                      tq=256, tk=512):
    """x_nchw: (B, C, H, W) float32.  Returns (B, C, H, W).

    tq/tk: query / key-value tile sizes over the flattened spatial axis.
    Defaults suit v6e/v7x (256-aligned MXU); use tq=tk=128 on v5e.
    """
    bsz, c, hgt, wid = x_nchw.shape
    hw = hgt * wid
    gs = c // num_groups
    assert num_groups * gs == c, "channels must be divisible by num_groups"

    x_f32 = x_nchw.astype(jnp.float32)

    # --- GroupNorm statistics (two-pass mean/var; kept outside the attention
    # kernel so the kernel stays tile-local over HW) ----------------------------
    xg = x_f32.reshape(bsz, num_groups, gs * hw)
    mean = jnp.mean(xg, axis=-1)                               # (B, G)
    var = jnp.var(xg, axis=-1)                                 # (B, G), two-pass
    inv = jax.lax.rsqrt(var + eps)                             # (B, G)
    mean_c = jnp.repeat(mean, gs, axis=-1)                     # (B, C)
    inv_c = jnp.repeat(inv, gs, axis=-1)                       # (B, C)
    gamma = params["gamma"].reshape(1, c).astype(jnp.float32)
    beta = params["beta"].reshape(1, c).astype(jnp.float32)
    a_scale = (gamma * inv_c).reshape(bsz, 1, c)               # (B, 1, C)
    b_shift = (beta - gamma * inv_c * mean_c).reshape(bsz, 1, c)

    # NCHW -> (B, HW, C) so 1x1 convs are matmuls over the channel axis.
    # TODO(synk): if the surrounding model keeps activations NHWC, these two
    # wrapper transposes (full HBM round-trips) can be dropped entirely.
    x = jnp.transpose(x_f32.reshape(bsz, c, hw), (0, 2, 1))

    # --- weights: Conv2d 1x1 (C_out, C_in, 1, 1) -> (C_in, C_out) matmul form --
    scale = 1.0 / math.sqrt(float(c))
    wq = params["wq"].reshape(c, c).T * scale                  # fold 1/sqrt(C)
    bq = (params["bq"].reshape(1, c) * scale).astype(jnp.float32)
    wk = params["wk"].reshape(c, c).T
    wv = params["wv"].reshape(c, c).T
    wkv = jnp.concatenate([wk, wv], axis=1)                    # (C, 2C) fused K/V
    bkv = jnp.concatenate([params["bk"].reshape(1, c),
                           params["bv"].reshape(1, c)], axis=1).astype(jnp.float32)
    wp = params["wp"].reshape(c, c).T
    bp = params["bp"].reshape(1, c).astype(jnp.float32)

    wq_b = wq.astype(jnp.bfloat16)
    wkv_b = wkv.astype(jnp.bfloat16)
    wp_b = wp.astype(jnp.bfloat16)

    tq = _pick_tile(hw, tq)
    tk = _pick_tile(hw, tk)
    nq = hw // tq
    nk = hw // tk

    kernel = functools.partial(_attn_flash_kernel, c=c)
    const2d = lambda shape: pl.BlockSpec(shape, lambda b, qi, ki: (0, 0))

    out = pl.pallas_call(
        kernel,
        out_shape=jax.ShapeDtypeStruct((bsz, hw, c), jnp.float32),
        grid_spec=pltpu.PrefetchScalarGridSpec(
            num_scalar_prefetch=0,
            grid=(bsz, nq, nk),
            in_specs=[
                pl.BlockSpec((1, tq, c), lambda b, qi, ki: (b, qi, 0)),  # x (query/residual tile)
                pl.BlockSpec((1, tk, c), lambda b, qi, ki: (b, ki, 0)),  # x (kv tile)
                pl.BlockSpec((1, 1, c), lambda b, qi, ki: (b, 0, 0)),    # norm scale
                pl.BlockSpec((1, 1, c), lambda b, qi, ki: (b, 0, 0)),    # norm shift
                const2d((c, c)),      # wq (bf16, scale folded)
                const2d((1, c)),      # bq
                const2d((c, 2 * c)),  # wkv (bf16)
                const2d((1, 2 * c)),  # bkv
                const2d((c, c)),      # wp (bf16)
                const2d((1, c)),      # bp
            ],
            out_specs=pl.BlockSpec((1, tq, c), lambda b, qi, ki: (b, qi, 0)),
            scratch_shapes=[
                pltpu.VMEM((tq, c), jnp.bfloat16),   # cached q tile
                pltpu.VMEM((tq, 1), jnp.float32),    # running max m
                pltpu.VMEM((tq, 1), jnp.float32),    # running denom l
                pltpu.VMEM((tq, c), jnp.float32),    # output accumulator
            ],
        ),
        compiler_params=pltpu.CompilerParams(
            dimension_semantics=("parallel", "parallel", "arbitrary"),
            vmem_limit_bytes=_vmem_limit_bytes(tq, tk, c),
        ),
    )(x, x, a_scale, b_shift, wq_b, bq, wkv_b, bkv, wp_b, bp)

    # (B, HW, C) -> NCHW
    return jnp.transpose(out, (0, 2, 1)).reshape(bsz, c, hgt, wid)


def _reference(x_nchw, params, *, num_groups=32, eps=1e-6):
    """Pure-JAX f32 reference matching the PyTorch forward."""
    b, c, hgt, wid = x_nchw.shape
    hw = hgt * wid
    gs = c // num_groups
    xg = x_nchw.reshape(b, num_groups, gs * hw)
    mean = xg.mean(axis=-1, keepdims=True)
    var = xg.var(axis=-1, keepdims=True)
    h = ((xg - mean) / jnp.sqrt(var + eps)).reshape(b, c, hgt, wid)
    h = h * params["gamma"].reshape(1, c, 1, 1) + params["beta"].reshape(1, c, 1, 1)
    hf = jnp.transpose(h.reshape(b, c, hw), (0, 2, 1))              # (B, HW, C)
    q = hf @ params["wq"].reshape(c, c).T + params["bq"]
    k = hf @ params["wk"].reshape(c, c).T + params["bk"]
    v = hf @ params["wv"].reshape(c, c).T + params["bv"]
    scores = (q @ jnp.swapaxes(k, -1, -2)) / jnp.sqrt(float(c))
    p = jax.nn.softmax(scores, axis=-1)
    o = p @ v
    y = o @ params["wp"].reshape(c, c).T + params["bp"]
    y = jnp.transpose(y, (0, 2, 1)).reshape(b, c, hgt, wid)
    return x_nchw + y


if __name__ == "__main__":
    key = jax.random.PRNGKey(0)
    keys = jax.random.split(key, 10)

    B, C, H, W = 2, 64, 16, 16      # C divisible by num_groups=32; HW=256
    x = jax.random.normal(keys[0], (B, C, H, W), dtype=jnp.float32)

    params = {
        "gamma": 1.0 + 0.1 * jax.random.normal(keys[9], (C,), jnp.float32),
        "beta": 0.1 * jax.random.normal(keys[0], (C,), jnp.float32),
        "wq": 0.05 * jax.random.normal(keys[1], (C, C, 1, 1), jnp.float32),
        "bq": 0.01 * jax.random.normal(keys[2], (C,), jnp.float32),
        "wk": 0.05 * jax.random.normal(keys[3], (C, C, 1, 1), jnp.float32),
        "bk": 0.01 * jax.random.normal(keys[4], (C,), jnp.float32),
        "wv": 0.05 * jax.random.normal(keys[5], (C, C, 1, 1), jnp.float32),
        "bv": 0.01 * jax.random.normal(keys[6], (C,), jnp.float32),
        "wp": 0.05 * jax.random.normal(keys[7], (C, C, 1, 1), jnp.float32),
        "bp": 0.01 * jax.random.normal(keys[8], (C,), jnp.float32),
    }

    ref = _reference(x, params)

    # Multi-tile flash path: 2 query tiles x 2 kv tiles.
    out = attn_block_pallas(x, params, tq=128, tk=128)
    out = jax.block_until_ready(out)
    assert out.shape == (B, C, H, W)
    # bf16 MXU path -> loosened tolerance vs. the f32 reference.
    assert jnp.allclose(out, ref, rtol=2e-2, atol=2e-2), "mismatch vs reference (tiled)"

    # Single-tile path (whole HW in one tile, default tile targets).
    out2 = attn_block_pallas(x, params)
    out2 = jax.block_until_ready(out2)
    assert jnp.allclose(out2, ref, rtol=2e-2, atol=2e-2), "mismatch vs reference (single tile)"

    print("KERNEL_OK")
</pallas_src>

<mosaic_0001>
module attributes {stable_mosaic.version = 11 : i64} {
  func.func @_attn_flash_kernel(%arg0: i32, %arg1: i32, %arg2: i32, %arg3: memref<1x128x64xf32, #tpu.memory_space<vmem>>, %arg4: memref<1x128x64xf32, #tpu.memory_space<vmem>>, %arg5: memref<1x1x64xf32, #tpu.memory_space<vmem>>, %arg6: memref<1x1x64xf32, #tpu.memory_space<vmem>>, %arg7: memref<64x64xbf16, #tpu.memory_space<vmem>>, %arg8: memref<1x64xf32, #tpu.memory_space<vmem>>, %arg9: memref<64x128xbf16, #tpu.memory_space<vmem>>, %arg10: memref<1x128xf32, #tpu.memory_space<vmem>>, %arg11: memref<64x64xbf16, #tpu.memory_space<vmem>>, %arg12: memref<1x64xf32, #tpu.memory_space<vmem>>, %arg13: memref<1x128x64xf32, #tpu.memory_space<vmem>>, %arg14: memref<128x64xbf16, #tpu.memory_space<vmem>>, %arg15: memref<128x1xf32, #tpu.memory_space<vmem>>, %arg16: memref<128x1xf32, #tpu.memory_space<vmem>>, %arg17: memref<128x64xf32, #tpu.memory_space<vmem>>) attributes {dimension_semantics = [#tpu.dimension_semantics<parallel>, #tpu.dimension_semantics<parallel>, #tpu.dimension_semantics<arbitrary>], iteration_bounds = array<i64: 2, 2, 2>, scalar_prefetch = 0 : i64, scratch_operands = 4 : i64, tpu.core_type = #tpu.core_type<tc>, window_params = [{transform_indices = @transform_0, window_bounds = array<i64: 1, 128, 64>}, {transform_indices = @transform_1, window_bounds = array<i64: 1, 128, 64>}, {transform_indices = @transform_2, window_bounds = array<i64: 1, 1, 64>}, {transform_indices = @transform_3, window_bounds = array<i64: 1, 1, 64>}, {pipeline_mode = #tpu.pipeline_mode<synchronous>, transform_indices = @transform_4, window_bounds = array<i64: 64, 64>}, {pipeline_mode = #tpu.pipeline_mode<synchronous>, transform_indices = @transform_5, window_bounds = array<i64: 1, 64>}, {pipeline_mode = #tpu.pipeline_mode<synchronous>, transform_indices = @transform_6, window_bounds = array<i64: 64, 128>}, {pipeline_mode = #tpu.pipeline_mode<synchronous>, transform_indices = @transform_7, window_bounds = array<i64: 1, 128>}, {pipeline_mode = #tpu.pipeline_mode<synchronous>, transform_indices = @transform_8, window_bounds = array<i64: 64, 64>}, {pipeline_mode = #tpu.pipeline_mode<synchronous>, transform_indices = @transform_9, window_bounds = array<i64: 1, 64>}, {transform_indices = @transform_10, window_bounds = array<i64: 1, 128, 64>}]} {
    %c0 = arith.constant 0 : index
    %c0_0 = arith.constant 0 : index
    %c0_1 = arith.constant 0 : index
    %0 = vector.load %arg5[%c0, %c0_0, %c0_1] : memref<1x1x64xf32, #tpu.memory_space<vmem>>, vector<1x1x64xf32>
    %1 = vector.shape_cast %0 : vector<1x1x64xf32> to vector<1x64xf32>
    %c0_2 = arith.constant 0 : index
    %c0_3 = arith.constant 0 : index
    %c0_4 = arith.constant 0 : index
    %2 = vector.load %arg6[%c0_2, %c0_3, %c0_4] : memref<1x1x64xf32, #tpu.memory_space<vmem>>, vector<1x1x64xf32>
    %3 = vector.shape_cast %2 : vector<1x1x64xf32> to vector<1x64xf32>
    %c0_i32 = arith.constant 0 : i32
    %4 = arith.cmpi eq, %arg2, %c0_i32 : i32
    %5 = arith.extui %4 : i1 to i32
    %c0_i32_5 = arith.constant 0 : i32
    %6 = arith.cmpi ne, %5, %c0_i32_5 : i32
    scf.if %6 {
      %c0_32 = arith.constant 0 : index
      %c0_33 = arith.constant 0 : index
      %c0_34 = arith.constant 0 : index
      %51 = vector.load %arg3[%c0_32, %c0_33, %c0_34] : memref<1x128x64xf32, #tpu.memory_space<vmem>>, vector<1x128x64xf32>
      %52 = vector.shape_cast %51 : vector<1x128x64xf32> to vector<128x64xf32>
      %53 = vector.broadcast %1 : vector<1x64xf32> to vector<128x64xf32>
      %54 = arith.mulf %52, %53 : vector<128x64xf32>
      %55 = vector.broadcast %3 : vector<1x64xf32> to vector<128x64xf32>
      %56 = arith.addf %54, %55 : vector<128x64xf32>
      %57 = arith.truncf %56 : vector<128x64xf32> to vector<128x64xbf16>
      %c0_35 = arith.constant 0 : index
      %c0_36 = arith.constant 0 : index
      %58 = vector.load %arg7[%c0_35, %c0_36] : memref<64x64xbf16, #tpu.memory_space<vmem>>, vector<64x64xbf16>
      %cst_37 = arith.constant dense<0.000000e+00> : vector<128x64xf32>
      %59 = tpu.matmul %57, %58, %cst_37 {dimension_numbers = #tpu.dot_dimension_numbers<[1], [0], [0], [1], [0, 0, 1, 1], [], []>} : vector<128x64xbf16>, vector<64x64xbf16>, vector<128x64xf32> -> vector<128x64xf32>
      %c0_38 = arith.constant 0 : index
      %c0_39 = arith.constant 0 : index
      %60 = vector.load %arg8[%c0_38, %c0_39] : memref<1x64xf32, #tpu.memory_space<vmem>>, vector<1x64xf32>
      %61 = vector.broadcast %60 : vector<1x64xf32> to vector<128x64xf32>
      %62 = arith.addf %59, %61 : vector<128x64xf32>
      %63 = arith.truncf %62 : vector<128x64xf32> to vector<128x64xbf16>
      %c0_40 = arith.constant 0 : index
      %c0_41 = arith.constant 0 : index
      %64 = vector.load %arg14[%c0_40, %c0_41] : memref<128x64xbf16, #tpu.memory_space<vmem>>, vector<128x64xbf16>
      tpu.vector_store %arg14[%c0_40, %c0_41], %63 {strides = array<i32>} : memref<128x64xbf16, #tpu.memory_space<vmem>>, vector<128x64xbf16>,
      %cst_42 = arith.constant 0xFF800000 : f32
      %65 = vector.broadcast %cst_42 : f32 to vector<128x1xf32>
      %c0_43 = arith.constant 0 : index
      %c0_44 = arith.constant 0 : index
      %66 = vector.load %arg15[%c0_43, %c0_44] : memref<128x1xf32, #tpu.memory_space<vmem>>, vector<128x1xf32>
      tpu.vector_store %arg15[%c0_43, %c0_44], %65 {strides = array<i32>} : memref<128x1xf32, #tpu.memory_space<vmem>>, vector<128x1xf32>,
      %cst_45 = arith.constant 0.000000e+00 : f32
      %67 = vector.broadcast %cst_45 : f32 to vector<128x1xf32>
      %c0_46 = arith.constant 0 : index
      %c0_47 = arith.constant 0 : index
      %68 = vector.load %arg16[%c0_46, %c0_47] : memref<128x1xf32, #tpu.memory_space<vmem>>, vector<128x1xf32>
      tpu.vector_store %arg16[%c0_46, %c0_47], %67 {strides = array<i32>} : memref<128x1xf32, #tpu.memory_space<vmem>>, vector<128x1xf32>,
      %cst_48 = arith.constant 0.000000e+00 : f32
      %69 = vector.broadcast %cst_48 : f32 to vector<128x64xf32>
      %c0_49 = arith.constant 0 : index
      %c0_50 = arith.constant 0 : index
      %70 = vector.load %arg17[%c0_49, %c0_50] : memref<128x64xf32, #tpu.memory_space<vmem>>, vector<128x64xf32>
      tpu.vector_store %arg17[%c0_49, %c0_50], %69 {strides = array<i32>} : memref<128x64xf32, #tpu.memory_space<vmem>>, vector<128x64xf32>,
    } else {
    }
    %c0_6 = arith.constant 0 : index
    %c0_7 = arith.constant 0 : index
    %c0_8 = arith.constant 0 : index
    %7 = vector.load %arg4[%c0_6, %c0_7, %c0_8] : memref<1x128x64xf32, #tpu.memory_space<vmem>>, vector<1x128x64xf32>
    %8 = vector.shape_cast %7 : vector<1x128x64xf32> to vector<128x64xf32>
    %9 = vector.broadcast %1 : vector<1x64xf32> to vector<128x64xf32>
    %10 = arith.mulf %8, %9 : vector<128x64xf32>
    %11 = vector.broadcast %3 : vector<1x64xf32> to vector<128x64xf32>
    %12 = arith.addf %10, %11 : vector<128x64xf32>
    %13 = arith.truncf %12 : vector<128x64xf32> to vector<128x64xbf16>
    %c0_9 = arith.constant 0 : index
    %c0_10 = arith.constant 0 : index
    %14 = vector.load %arg9[%c0_9, %c0_10] : memref<64x128xbf16, #tpu.memory_space<vmem>>, vector<64x128xbf16>
    %cst = arith.constant dense<0.000000e+00> : vector<128x128xf32>
    %15 = tpu.matmul %13, %14, %cst {dimension_numbers = #tpu.dot_dimension_numbers<[1], [0], [0], [1], [0, 0, 1, 1], [], []>} : vector<128x64xbf16>, vector<64x128xbf16>, vector<128x128xf32> -> vector<128x128xf32>
    %c0_11 = arith.constant 0 : index
    %c0_12 = arith.constant 0 : index
    %16 = vector.load %arg10[%c0_11, %c0_12] : memref<1x128xf32, #tpu.memory_space<vmem>>, vector<1x128xf32>
    %17 = vector.broadcast %16 : vector<1x128xf32> to vector<128x128xf32>
    %18 = arith.addf %15, %17 : vector<128x128xf32>
    %19 = vector.extract_strided_slice %18 {offsets = [0, 0], sizes = [128, 64], strides = [1, 1]} : vector<128x128xf32> to vector<128x64xf32>
    %20 = arith.truncf %19 : vector<128x64xf32> to vector<128x64xbf16>
    %21 = vector.extract_strided_slice %18 {offsets = [0, 64], sizes = [128, 64], strides = [1, 1]} : vector<128x128xf32> to vector<128x64xf32>
    %22 = arith.truncf %21 : vector<128x64xf32> to vector<128x64xbf16>
    %c0_13 = arith.constant 0 : index
    %c0_14 = arith.constant 0 : index
    %23 = vector.load %arg14[%c0_13, %c0_14] : memref<128x64xbf16, #tpu.memory_space<vmem>>, vector<128x64xbf16>
    %cst_15 = arith.constant dense<0.000000e+00> : vector<128x128xf32>
    %24 = tpu.matmul %23, %20, %cst_15 {dimension_numbers = #tpu.dot_dimension_numbers<[1], [1], [0], [0], [0, 0, 1, 0], [], []>} : vector<128x64xbf16>, vector<128x64xbf16>, vector<128x128xf32> -> vector<128x128xf32>
    %c0_16 = arith.constant 0 : index
    %c0_17 = arith.constant 0 : index
    %25 = vector.load %arg15[%c0_16, %c0_17] : memref<128x1xf32, #tpu.memory_space<vmem>>, vector<128x1xf32>
    %cst_18 = arith.constant dense<0xFF800000> : vector<128xf32>
    %26 = vector.multi_reduction <maximumf>, %24, %cst_18 [1] : vector<128x128xf32> to vector<128xf32>
    %27 = vector.shape_cast %26 : vector<128xf32> to vector<128x1xf32>
    %28 = arith.maximumf %25, %27 : vector<128x1xf32>
    %29 = arith.subf %25, %28 : vector<128x1xf32>
    %30 = math.exp %29 : vector<128x1xf32>
    %31 = vector.broadcast %28 : vector<128x1xf32> to vector<128x128xf32>
    %32 = arith.subf %24, %31 : vector<128x128xf32>
    %33 = math.exp %32 : vector<128x128xf32>
    %c0_19 = arith.constant 0 : index
    %c0_20 = arith.constant 0 : index
    %34 = vector.load %arg16[%c0_19, %c0_20] : memref<128x1xf32, #tpu.memory_space<vmem>>, vector<128x1xf32>
    %35 = arith.mulf %30, %34 : vector<128x1xf32>
    %cst_21 = arith.constant dense<0.000000e+00> : vector<128xf32>
    %36 = vector.multi_reduction <add>, %33, %cst_21 [1] : vector<128x128xf32> to vector<128xf32>
    %37 = vector.shape_cast %36 : vector<128xf32> to vector<128x1xf32>
    %38 = arith.addf %35, %37 : vector<128x1xf32>
    %c0_22 = arith.constant 0 : index
    %c0_23 = arith.constant 0 : index
    %39 = vector.load %arg16[%c0_22, %c0_23] : memref<128x1xf32, #tpu.memory_space<vmem>>, vector<128x1xf32>
    tpu.vector_store %arg16[%c0_22, %c0_23], %38 {strides = array<i32>} : memref<128x1xf32, #tpu.memory_space<vmem>>, vector<128x1xf32>,
    %c0_24 = arith.constant 0 : index
    %c0_25 = arith.constant 0 : index
    %40 = vector.load %arg17[%c0_24, %c0_25] : memref<128x64xf32, #tpu.memory_space<vmem>>, vector<128x64xf32>
    %41 = vector.broadcast %30 : vector<128x1xf32> to vector<128x64xf32>
    %42 = arith.mulf %41, %40 : vector<128x64xf32>
    %43 = arith.truncf %33 : vector<128x128xf32> to vector<128x128xbf16>
    %cst_26 = arith.constant dense<0.000000e+00> : vector<128x64xf32>
    %44 = tpu.matmul %43, %22, %cst_26 {dimension_numbers = #tpu.dot_dimension_numbers<[1], [0], [0], [1], [0, 0, 1, 1], [], []>} : vector<128x128xbf16>, vector<128x64xbf16>, vector<128x64xf32> -> vector<128x64xf32>
    %45 = arith.addf %42, %44 : vector<128x64xf32>
    %c0_27 = arith.constant 0 : index
    %c0_28 = arith.constant 0 : index
    %46 = vector.load %arg17[%c0_27, %c0_28] : memref<128x64xf32, #tpu.memory_space<vmem>>, vector<128x64xf32>
    tpu.vector_store %arg17[%c0_27, %c0_28], %45 {strides = array<i32>} : memref<128x64xf32, #tpu.memory_space<vmem>>, vector<128x64xf32>,
    %c0_29 = arith.constant 0 : index
    %c0_30 = arith.constant 0 : index
    %47 = vector.load %arg15[%c0_29, %c0_30] : memref<128x1xf32, #tpu.memory_space<vmem>>, vector<128x1xf32>
    tpu.vector_store %arg15[%c0_29, %c0_30], %28 {strides = array<i32>} : memref<128x1xf32, #tpu.memory_space<vmem>>, vector<128x1xf32>,
    %c1_i32 = arith.constant 1 : i32
    %48 = arith.cmpi eq, %arg2, %c1_i32 : i32
    %49 = arith.extui %48 : i1 to i32
    %c0_i32_31 = arith.constant 0 : i32
    %50 = arith.cmpi ne, %49, %c0_i32_31 : i32
    scf.if %50 {
      %c0_32 = arith.constant 0 : index
      %c0_33 = arith.constant 0 : index
      %51 = vector.load %arg17[%c0_32, %c0_33] : memref<128x64xf32, #tpu.memory_space<vmem>>, vector<128x64xf32>
      %c0_34 = arith.constant 0 : index
      %c0_35 = arith.constant 0 : index
      %52 = vector.load %arg16[%c0_34, %c0_35] : memref<128x1xf32, #tpu.memory_space<vmem>>, vector<128x1xf32>
      %53 = tpu.reciprocal %52 {approx = true} : vector<128x1xf32> -> vector<128x1xf32>
      %54 = vector.broadcast %53 : vector<128x1xf32> to vector<128x64xf32>
      %55 = arith.mulf %51, %54 : vector<128x64xf32>
      %56 = arith.truncf %55 : vector<128x64xf32> to vector<128x64xbf16>
      %c0_36 = arith.constant 0 : index
      %c0_37 = arith.constant 0 : index
      %57 = vector.load %arg11[%c0_36, %c0_37] : memref<64x64xbf16, #tpu.memory_space<vmem>>, vector<64x64xbf16>
      %cst_38 = arith.constant dense<0.000000e+00> : vector<128x64xf32>
      %58 = tpu.matmul %56, %57, %cst_38 {dimension_numbers = #tpu.dot_dimension_numbers<[1], [0], [0], [1], [0, 0, 1, 1], [], []>} : vector<128x64xbf16>, vector<64x64xbf16>, vector<128x64xf32> -> vector<128x64xf32>
      %c0_39 = arith.constant 0 : index
      %c0_40 = arith.constant 0 : index
      %59 = vector.load %arg12[%c0_39, %c0_40] : memref<1x64xf32, #tpu.memory_space<vmem>>, vector<1x64xf32>
      %60 = vector.broadcast %59 : vector<1x64xf32> to vector<128x64xf32>
      %61 = arith.addf %58, %60 : vector<128x64xf32>
      %c0_41 = arith.constant 0 : index
      %c0_42 = arith.constant 0 : index
      %c0_43 = arith.constant 0 : index
      %62 = vector.load %arg3[%c0_41, %c0_42, %c0_43] : memref<1x128x64xf32, #tpu.memory_space<vmem>>, vector<1x128x64xf32>
      %63 = vector.shape_cast %62 : vector<1x128x64xf32> to vector<128x64xf32>
      %64 = arith.addf %63, %61 : vector<128x64xf32>
      %c0_44 = arith.constant 0 : index
      %c0_45 = arith.constant 0 : index
      %c0_46 = arith.constant 0 : index
      %65 = vector.load %arg13[%c0_44, %c0_45, %c0_46] : memref<1x128x64xf32, #tpu.memory_space<vmem>>, vector<1x128x64xf32>
      %66 = vector.shape_cast %65 : vector<1x128x64xf32> to vector<128x64xf32>
      %67 = vector.shape_cast %64 : vector<128x64xf32> to vector<1x128x64xf32>
      tpu.vector_store %arg13[%c0_44, %c0_45, %c0_46], %67 {strides = array<i32>} : memref<1x128x64xf32, #tpu.memory_space<vmem>>, vector<1x128x64xf32>,
    } else {
    }
    return
  }
  func.func @transform_0(%arg0: i32, %arg1: i32, %arg2: i32) -> (i32, i32, i32) {
    %c0_i32 = arith.constant 0 : i32
    %c0_i32_0 = arith.constant 0 : i32
    return %arg0, %arg1, %c0_i32 : i32, i32, i32
  }
  func.func @transform_1(%arg0: i32, %arg1: i32, %arg2: i32) -> (i32, i32, i32) {
    %c0_i32 = arith.constant 0 : i32
    %c0_i32_0 = arith.constant 0 : i32
    return %arg0, %arg2, %c0_i32 : i32, i32, i32
  }
  func.func @transform_2(%arg0: i32, %arg1: i32, %arg2: i32) -> (i32, i32, i32) {
    %c0_i32 = arith.constant 0 : i32
    %c0_i32_0 = arith.constant 0 : i32
    %c0_i32_1 = arith.constant 0 : i32
    return %arg0, %c0_i32, %c0_i32_0 : i32, i32, i32
  }
  func.func @transform_3(%arg0: i32, %arg1: i32, %arg2: i32) -> (i32, i32, i32) {
    %c0_i32 = arith.constant 0 : i32
    %c0_i32_0 = arith.constant 0 : i32
    %c0_i32_1 = arith.constant 0 : i32
    return %arg0, %c0_i32, %c0_i32_0 : i32, i32, i32
  }
  func.func @transform_4(%arg0: i32, %arg1: i32, %arg2: i32) -> (i32, i32) {
    %c0_i32 = arith.constant 0 : i32
    %c0_i32_0 = arith.constant 0 : i32
    %c0_i32_1 = arith.constant 0 : i32
    return %c0_i32, %c0_i32_0 : i32, i32
  }
  func.func @transform_5(%arg0: i32, %arg1: i32, %arg2: i32) -> (i32, i32) {
    %c0_i32 = arith.constant 0 : i32
    %c0_i32_0 = arith.constant 0 : i32
    %c0_i32_1 = arith.constant 0 : i32
    return %c0_i32, %c0_i32_0 : i32, i32
  }
  func.func @transform_6(%arg0: i32, %arg1: i32, %arg2: i32) -> (i32, i32) {
    %c0_i32 = arith.constant 0 : i32
    %c0_i32_0 = arith.constant 0 : i32
    %c0_i32_1 = arith.constant 0 : i32
    return %c0_i32, %c0_i32_0 : i32, i32
  }
  func.func @transform_7(%arg0: i32, %arg1: i32, %arg2: i32) -> (i32, i32) {
    %c0_i32 = arith.constant 0 : i32
    %c0_i32_0 = arith.constant 0 : i32
    %c0_i32_1 = arith.constant 0 : i32
    return %c0_i32, %c0_i32_0 : i32, i32
  }
  func.func @transform_8(%arg0: i32, %arg1: i32, %arg2: i32) -> (i32, i32) {
    %c0_i32 = arith.constant 0 : i32
    %c0_i32_0 = arith.constant 0 : i32
    %c0_i32_1 = arith.constant 0 : i32
    return %c0_i32, %c0_i32_0 : i32, i32
  }
  func.func @transform_9(%arg0: i32, %arg1: i32, %arg2: i32) -> (i32, i32) {
    %c0_i32 = arith.constant 0 : i32
    %c0_i32_0 = arith.constant 0 : i32
    %c0_i32_1 = arith.constant 0 : i32
    return %c0_i32, %c0_i32_0 : i32, i32
  }
  func.func @transform_10(%arg0: i32, %arg1: i32, %arg2: i32) -> (i32, i32, i32) {
    %c0_i32 = arith.constant 0 : i32
    %c0_i32_0 = arith.constant 0 : i32
    return %arg0, %arg1, %c0_i32 : i32, i32, i32
  }
}

</mosaic_0001>

<llo_original>
// kernel: tpu_custom_call.1
$region0: #{tpu_custom_call.1}
  #allocation0 [shape = 'u32[]', space=smem, size = 0x4, offset = 0x4, fixed_abs, tag = 'smem constant byte address 0x4 - core index']
  #allocation1 [shape = 'u32[144,128]{1,0:T(1,128)}', space=vmem, size = 0x12000, scoped, tag = 'internal scratch']
  #allocation2 [shape = 'bf16[128,64]{1,0:T(16,128)(2,1)}', space=vmem, size = 0x8000, scoped, tag = 'scratch operand']
  #allocation3 [shape = 'f32[128,1]{1,0:T(8,128)}', space=vmem, size = 0x10000, scoped, tag = 'scratch operand']
  #allocation4 [shape = 'f32[128,1]{1,0:T(8,128)}', space=vmem, size = 0x10000, scoped, tag = 'scratch operand']
  #allocation5 [shape = 'f32[128,64]{1,0:T(8,128)}', space=vmem, size = 0x10000, scoped, tag = 'scratch operand']
  %s0 = inlined_call_operand.vmem [shape: f32[2,256,64], index: 0, kind: input, shape index: {}]
  %s1 = inlined_call_operand.vmem [shape: f32[2,256,64], index: 1, kind: input, shape index: {}]
  %s2 = inlined_call_operand.vmem [shape: f32[2,1,64], index: 2, kind: input, shape index: {}]
  %s3 = inlined_call_operand.vmem [shape: f32[2,1,64], index: 3, kind: input, shape index: {}]
  %s4 = inlined_call_operand.vmem [shape: bf16[64,64], index: 4, kind: input, shape index: {}]
  %s5 = inlined_call_operand.vmem [shape: f32[1,64], index: 5, kind: input, shape index: {}]
  %s6 = inlined_call_operand.vmem [shape: bf16[64,128], index: 6, kind: input, shape index: {}]
  %s7 = inlined_call_operand.vmem [shape: f32[1,128], index: 7, kind: input, shape index: {}]
  %s8 = inlined_call_operand.vmem [shape: bf16[64,64], index: 8, kind: input, shape index: {}]
  %s9 = inlined_call_operand.vmem [shape: f32[1,64], index: 9, kind: input, shape index: {}]
  %s10 = inlined_call_operand.vmem [shape: f32[2,256,64], index: 10, kind: output, shape index: {}]
  %s11 = sld [smem:[#allocation0]]
  $region81: #{tpu_custom_call.1} parent=0
    _
  %s13 = ssub.s32 1, %s11
  %s14 = scalar_select 0, %s13, %s11
  loop: start=0, step=1, limit=10
  $region2: #{tpu_custom_call.1} parent=0 // loop_pre_header
    _
  $region3: #{tpu_custom_call.1} parent=0 // loop_header
    %s16 = sphi 0, %s20
    %p17 = scmp.ge.s32.totalorder %s16, 10
    %s23 = sphi 0, %s42
    %s24 = sphi 0, %s38
    %s25 = sphi 0, %s34
    %s26 = sphi 0, %s23
    %s27 = sphi 0, %s24
    %s28 = sphi 0, %s25
    %s29 = sphi 0, %s26
    %s30 = sphi 0, %s27
    %s31 = sphi 0, %s28
    %s47 = sphi 0, %s49
    %s50 = sphi 0, %s47
    %s51 = sphi 0, %s50
    %s67 = sphi 0, %s51
    %s75 = sphi 0, %s77
    %s78 = sphi 0, %s75
    %s79 = sphi 0, %s78
    %s95 = sphi 0, %s79
    %s101 = sphi 0, %s103
    %s104 = sphi 0, %s101
    %s105 = sphi 0, %s104
    %s121 = sphi 0, %s105
    %s127 = sphi 0, %s129
    %s130 = sphi 0, %s127
    %s131 = sphi 0, %s130
    %s147 = sphi 0, %s131
    %s151 = sphi 0, %s151
    %s153 = sphi 0, %s151
    %s154 = sphi 0, %s153
    %s168 = sphi 0, %s154
    %s172 = sphi 0, %s172
    %s174 = sphi 0, %s172
    %s175 = sphi 0, %s174
    %s189 = sphi 0, %s175
    %s193 = sphi 0, %s193
    %s195 = sphi 0, %s193
    %s196 = sphi 0, %s195
    %s210 = sphi 0, %s196
    %s214 = sphi 0, %s214
    %s216 = sphi 0, %s214
    %s217 = sphi 0, %s216
    %s231 = sphi 0, %s217
    %s235 = sphi 0, %s235
    %s237 = sphi 0, %s235
    %s238 = sphi 0, %s237
    %s252 = sphi 0, %s238
    %s256 = sphi 0, %s256
    %s258 = sphi 0, %s256
    %s259 = sphi 0, %s258
    %s273 = sphi 0, %s259
    %s281 = sphi 0, %s283
    %s284 = sphi 0, %s281
    %s285 = sphi 0, %s284
    %s301 = sphi 0, %s285
  $region4: #{tpu_custom_call.1} parent=0 // loop_header_branch
    %19 = sbr.rel (%p17) target = $region8
  $region5: #{tpu_custom_call.1} parent=0 // loop_body
    %s21 = ssub.s32 %s16, 1
    %s22 = ssub.s32 %s16, 2
    %s32 = sadd.s32 1, %s25
    %p33 = scmp.ge.s32.totalorder %s32, 2
    %s34 = scalar_select %p33, 0, %s32
    %s35 = sadd.s32 1, %s24
    %s36 = scalar_select %p33, %s35, %s24
    %p37 = scmp.ge.s32.totalorder %s36, 2
    %s38 = scalar_select %p37, 0, %s36
    %s39 = sadd.s32 1, %s23
    %s40 = scalar_select %p37, %s39, %s23
    %p41 = scmp.ge.s32.totalorder %s40, 2
    %s42 = scalar_select %p41, 0, %s40
    %s43 = ssub.s32 %s23, %s42
    %s44 = ssub.s32 %s24, %s38
    %s45 = sor.u32 %s43, %s44
    %p46 = scmp.eq.s32.totalorder %s45, 0
    %s48 = sadd.s32 %s47, 1
    %s49 = scalar_select %p46, %s47, %s48
    %p52 = pneg %p46
    %p53 = scmp.eq.s32.totalorder %s16, 7
    %p54 = por %p52, %p53
    %p55 = scmp.ne.s32.totalorder %s47, %s50
    %p56 = scmp.eq.s32.totalorder %s16, 0
    %p57 = por %p55, %p56
    %p58 = scmp.ne.s32.totalorder %s47, %s50
    %p59 = scmp.eq.s32.totalorder %s21, 7
    %p60 = por %p58, %p59
    %p61 = scmp.ne.s32.totalorder %s50, %s51
    %p62 = scmp.eq.s32.totalorder %s21, 0
    %p63 = por %p61, %p62
    %p64 = scmp.ne.s32.totalorder %s50, %s51
    %p65 = scmp.eq.s32.totalorder %s22, 7
    %p66 = por %p64, %p65
    %p68 = scmp.ne.s32.totalorder %s51, %s67
    %p69 = scmp.eq.s32.totalorder %s22, 0
    %p70 = por %p68, %p69
    %s71 = ssub.s32 %s23, %s42
    %s72 = ssub.s32 %s25, %s34
    %s73 = sor.u32 %s71, %s72
    %p74 = scmp.eq.s32.totalorder %s73, 0
    %s76 = sadd.s32 %s75, 1
    %s77 = scalar_select %p74, %s75, %s76
    %p80 = pneg %p74
    %p81 = scmp.eq.s32.totalorder %s16, 7
    %p82 = por %p80, %p81
    %p83 = scmp.ne.s32.totalorder %s75, %s78
    %p84 = scmp.eq.s32.totalorder %s16, 0
    %p85 = por %p83, %p84
    %p86 = scmp.ne.s32.totalorder %s75, %s78
    %p87 = scmp.eq.s32.totalorder %s21, 7
    %p88 = por %p86, %p87
    %p89 = scmp.ne.s32.totalorder %s78, %s79
    %p90 = scmp.eq.s32.totalorder %s21, 0
    %p91 = por %p89, %p90
    %p92 = scmp.ne.s32.totalorder %s78, %s79
    %p93 = scmp.eq.s32.totalorder %s22, 7
    %p94 = por %p92, %p93
    %p96 = scmp.ne.s32.totalorder %s79, %s95
    %p97 = scmp.eq.s32.totalorder %s22, 0
    %p98 = por %p96, %p97
    %s99 = ssub.s32 %s23, %s42
    %p100 = scmp.eq.s32.totalorder %s99, 0
    %s102 = sadd.s32 %s101, 1
    %s103 = scalar_select %p100, %s101, %s102
    %p106 = pneg %p100
    %p107 = scmp.eq.s32.totalorder %s16, 7
    %p108 = por %p106, %p107
    %p109 = scmp.ne.s32.totalorder %s101, %s104
    %p110 = scmp.eq.s32.totalorder %s16, 0
    %p111 = por %p109, %p110
    %p112 = scmp.ne.s32.totalorder %s101, %s104
    %p113 = scmp.eq.s32.totalorder %s21, 7
    %p114 = por %p112, %p113
    %p115 = scmp.ne.s32.totalorder %s104, %s105
    %p116 = scmp.eq.s32.totalorder %s21, 0
    %p117 = por %p115, %p116
    %p118 = scmp.ne.s32.totalorder %s104, %s105
    %p119 = scmp.eq.s32.totalorder %s22, 7
    %p120 = por %p118, %p119
    %p122 = scmp.ne.s32.totalorder %s105, %s121
    %p123 = scmp.eq.s32.totalorder %s22, 0
    %p124 = por %p122, %p123
    %s125 = ssub.s32 %s23, %s42
    %p126 = scmp.eq.s32.totalorder %s125, 0
    %s128 = sadd.s32 %s127, 1
    %s129 = scalar_select %p126, %s127, %s128
    %p132 = pneg %p126
    %p133 = scmp.eq.s32.totalorder %s16, 7
    %p134 = por %p132, %p133
    %p135 = scmp.ne.s32.totalorder %s127, %s130
    %p136 = scmp.eq.s32.totalorder %s16, 0
    %p137 = por %p135, %p136
    %p138 = scmp.ne.s32.totalorder %s127, %s130
    %p139 = scmp.eq.s32.totalorder %s21, 7
    %p140 = por %p138, %p139
    %p141 = scmp.ne.s32.totalorder %s130, %s131
    %p142 = scmp.eq.s32.totalorder %s21, 0
    %p143 = por %p141, %p142
    %p144 = scmp.ne.s32.totalorder %s130, %s131
    %p145 = scmp.eq.s32.totalorder %s22, 7
    %p146 = por %p144, %p145
    %p148 = scmp.ne.s32.totalorder %s131, %s147
    %p149 = scmp.eq.s32.totalorder %s22, 0
    %p150 = por %p148, %p149
    %s152 = sadd.s32 %s151, 1
    %p155 = scmp.eq.s32.totalorder %s16, 7
    %p156 = scmp.ne.s32.totalorder %s151, %s153
    %p157 = scmp.eq.s32.totalorder %s16, 0
    %p158 = por %p156, %p157
    %p159 = scmp.ne.s32.totalorder %s151, %s153
    %p160 = scmp.eq.s32.totalorder %s21, 7
    %p161 = por %p159, %p160
    %p162 = scmp.ne.s32.totalorder %s153, %s154
    %p163 = scmp.eq.s32.totalorder %s21, 0
    %p164 = por %p162, %p163
    %p165 = scmp.ne.s32.totalorder %s153, %s154
    %p166 = scmp.eq.s32.totalorder %s22, 7
    %p167 = por %p165, %p166
    %p169 = scmp.ne.s32.totalorder %s154, %s168
    %p170 = scmp.eq.s32.totalorder %s22, 0
    %p171 = por %p169, %p170
    %s173 = sadd.s32 %s172, 1
    %p176 = scmp.eq.s32.totalorder %s16, 7
    %p177 = scmp.ne.s32.totalorder %s172, %s174
    %p178 = scmp.eq.s32.totalorder %s16, 0
    %p179 = por %p177, %p178
    %p180 = scmp.ne.s32.totalorder %s172, %s174
    %p181 = scmp.eq.s32.totalorder %s21, 7
    %p182 = por %p180, %p181
    %p183 = scmp.ne.s32.totalorder %s174, %s175
    %p184 = scmp.eq.s32.totalorder %s21, 0
    %p185 = por %p183, %p184
    %p186 = scmp.ne.s32.totalorder %s174, %s175
    %p187 = scmp.eq.s32.totalorder %s22, 7
    %p188 = por %p186, %p187
    %p190 = scmp.ne.s32.totalorder %s175, %s189
    %p191 = scmp.eq.s32.totalorder %s22, 0
    %p192 = por %p190, %p191
    %s194 = sadd.s32 %s193, 1
    %p197 = scmp.eq.s32.totalorder %s16, 7
    %p198 = scmp.ne.s32.totalorder %s193, %s195
    %p199 = scmp.eq.s32.totalorder %s16, 0
    %p200 = por %p198, %p199
    %p201 = scmp.ne.s32.totalorder %s193, %s195
    %p202 = scmp.eq.s32.totalorder %s21, 7
    %p203 = por %p201, %p202
    %p204 = scmp.ne.s32.totalorder %s195, %s196
    %p205 = scmp.eq.s32.totalorder %s21, 0
    %p206 = por %p204, %p205
    %p207 = scmp.ne.s32.totalorder %s195, %s196
    %p208 = scmp.eq.s32.totalorder %s22, 7
    %p209 = por %p207, %p208
    %p211 = scmp.ne.s32.totalorder %s196, %s210
    %p212 = scmp.eq.s32.totalorder %s22, 0
    %p213 = por %p211, %p212
    %s215 = sadd.s32 %s214, 1
    %p218 = scmp.eq.s32.totalorder %s16, 7
    %p219 = scmp.ne.s32.totalorder %s214, %s216
    %p220 = scmp.eq.s32.totalorder %s16, 0
    %p221 = por %p219, %p220
    %p222 = scmp.ne.s32.totalorder %s214, %s216
    %p223 = scmp.eq.s32.totalorder %s21, 7
    %p224 = por %p222, %p223
    %p225 = scmp.ne.s32.totalorder %s216, %s217
    %p226 = scmp.eq.s32.totalorder %s21, 0
    %p227 = por %p225, %p226
    %p228 = scmp.ne.s32.totalorder %s216, %s217
    %p229 = scmp.eq.s32.totalorder %s22, 7
    %p230 = por %p228, %p229
    %p232 = scmp.ne.s32.totalorder %s217, %s231
    %p233 = scmp.eq.s32.totalorder %s22, 0
    %p234 = por %p232, %p233
    %s236 = sadd.s32 %s235, 1
    %p239 = scmp.eq.s32.totalorder %s16, 7
    %p240 = scmp.ne.s32.totalorder %s235, %s237
    %p241 = scmp.eq.s32.totalorder %s16, 0
    %p242 = por %p240, %p241
    %p243 = scmp.ne.s32.totalorder %s235, %s237
    %p244 = scmp.eq.s32.totalorder %s21, 7
    %p245 = por %p243, %p244
    %p246 = scmp.ne.s32.totalorder %s237, %s238
    %p247 = scmp.eq.s32.totalorder %s21, 0
    %p248 = por %p246, %p247
    %p249 = scmp.ne.s32.totalorder %s237, %s238
    %p250 = scmp.eq.s32.totalorder %s22, 7
    %p251 = por %p249, %p250
    %p253 = scmp.ne.s32.totalorder %s238, %s252
    %p254 = scmp.eq.s32.totalorder %s22, 0
    %p255 = por %p253, %p254
    %s257 = sadd.s32 %s256, 1
    %p260 = scmp.eq.s32.totalorder %s16, 7
    %p261 = scmp.ne.s32.totalorder %s256, %s258
    %p262 = scmp.eq.s32.totalorder %s16, 0
    %p263 = por %p261, %p262
    %p264 = scmp.ne.s32.totalorder %s256, %s258
    %p265 = scmp.eq.s32.totalorder %s21, 7
    %p266 = por %p264, %p265
    %p267 = scmp.ne.s32.totalorder %s258, %s259
    %p268 = scmp.eq.s32.totalorder %s21, 0
    %p269 = por %p267, %p268
    %p270 = scmp.ne.s32.totalorder %s258, %s259
    %p271 = scmp.eq.s32.totalorder %s22, 7
    %p272 = por %p270, %p271
    %p274 = scmp.ne.s32.totalorder %s259, %s273
    %p275 = scmp.eq.s32.totalorder %s22, 0
    %p276 = por %p274, %p275
    %s277 = ssub.s32 %s23, %s42
    %s278 = ssub.s32 %s24, %s38
    %s279 = sor.u32 %s277, %s278
    %p280 = scmp.eq.s32.totalorder %s279, 0
    %s282 = sadd.s32 %s281, 1
    %s283 = scalar_select %p280, %s281, %s282
    %p286 = pneg %p280
    %p287 = scmp.eq.s32.totalorder %s16, 7
    %p288 = por %p286, %p287
    %p289 = scmp.ne.s32.totalorder %s281, %s284
    %p290 = scmp.eq.s32.totalorder %s16, 0
    %p291 = por %p289, %p290
    %p292 = scmp.ne.s32.totalorder %s281, %s284
    %p293 = scmp.eq.s32.totalorder %s21, 7
    %p294 = por %p292, %p293
    %p295 = scmp.ne.s32.totalorder %s284, %s285
    %p296 = scmp.eq.s32.totalorder %s21, 0
    %p297 = por %p295, %p296
    %p298 = scmp.ne.s32.totalorder %s284, %s285
    %p299 = scmp.eq.s32.totalorder %s22, 7
    %p300 = por %p298, %p299
    %p302 = scmp.ne.s32.totalorder %s285, %s301
    %p303 = scmp.eq.s32.totalorder %s22, 0
    %p304 = por %p302, %p303
    %p305 = scmp.le.s32.totalorder 1, %s16
    %p306 = scmp.lt.s32.totalorder %s16, 9
    %p307 = pnand %p305, %p306
    %p308 = pneg %p307
    // Predicated region
    $region9: #{tpu_custom_call.1} parent=5 // pred_check
      _
    $region10: #{tpu_custom_call.1} parent=5 // pred_check_branch
      %310 = sbr.rel (%p307) target = $region12
    $region11: #{tpu_custom_call.1} parent=5 // pred_region
      %s311 = ssub.s32 %s16, 1
      // Predicated region
      $region13: #{tpu_custom_call.1} parent=11 // pred_check
        %p312 = pneg %p164
      $region14: #{tpu_custom_call.1} parent=11 // pred_check_branch
        %314 = sbr.rel (%p312) target = $region16
      $region15: #{tpu_custom_call.1} parent=11 // pred_region
        _
      $region16: #{tpu_custom_call.1} parent=11 // pred_fallthru
        _
      // Predicated region
      $region17: #{tpu_custom_call.1} parent=11 // pred_check
        %p315 = pneg %p185
      $region18: #{tpu_custom_call.1} parent=11 // pred_check_branch
        %317 = sbr.rel (%p315) target = $region20
      $region19: #{tpu_custom_call.1} parent=11 // pred_region
        _
      $region20: #{tpu_custom_call.1} parent=11 // pred_fallthru
        _
      // Predicated region
      $region21: #{tpu_custom_call.1} parent=11 // pred_check
        %p318 = pneg %p206
      $region22: #{tpu_custom_call.1} parent=11 // pred_check_branch
        %320 = sbr.rel (%p318) target = $region24
      $region23: #{tpu_custom_call.1} parent=11 // pred_region
        _
      $region24: #{tpu_custom_call.1} parent=11 // pred_fallthru
        _
      // Predicated region
      $region25: #{tpu_custom_call.1} parent=11 // pred_check
        %p321 = pneg %p227
      $region26: #{tpu_custom_call.1} parent=11 // pred_check_branch
        %323 = sbr.rel (%p321) target = $region28
      $region27: #{tpu_custom_call.1} parent=11 // pred_region
        _
      $region28: #{tpu_custom_call.1} parent=11 // pred_fallthru
        _
      // Predicated region
      $region29: #{tpu_custom_call.1} parent=11 // pred_check
        %p324 = pneg %p248
      $region30: #{tpu_custom_call.1} parent=11 // pred_check_branch
        %326 = sbr.rel (%p324) target = $region32
      $region31: #{tpu_custom_call.1} parent=11 // pred_region
        _
      $region32: #{tpu_custom_call.1} parent=11 // pred_fallthru
        _
      // Predicated region
      $region33: #{tpu_custom_call.1} parent=11 // pred_check
        %p327 = pneg %p269
      $region34: #{tpu_custom_call.1} parent=11 // pred_check_branch
        %329 = sbr.rel (%p327) target = $region36
      $region35: #{tpu_custom_call.1} parent=11 // pred_region
        _
      $region36: #{tpu_custom_call.1} parent=11 // pred_fallthru
        _
    $region12: #{tpu_custom_call.1} parent=5 // pred_fallthru
      _
    %p330 = scmp.lt.s32.totalorder %s16, 8
    // Predicated region
    $region37: #{tpu_custom_call.1} parent=5 // pred_check
      %p331 = pneg %p330
    $region38: #{tpu_custom_call.1} parent=5 // pred_check_branch
      %333 = sbr.rel (%p331) target = $region40
    $region39: #{tpu_custom_call.1} parent=5 // pred_region
      // Predicated region
      $region41: #{tpu_custom_call.1} parent=39 // pred_check
        %p334 = pneg %p57
      $region42: #{tpu_custom_call.1} parent=39 // pred_check_branch
        %336 = sbr.rel (%p334) target = $region44
      $region43: #{tpu_custom_call.1} parent=39 // pred_region
        %s337 = smul.u32 16, %s24
        %p338 = scmp.lt.s32.totalorder %s23, 1
        %s339 = scalar_select %p338, %s23, 1
        %p340 = scmp.lt.s32.totalorder %s337, 31
        %s341 = scalar_select %p340, %s337, 31
        %s342 = smul.addr %s339, 32
        %s343 = sadd.s32 %s341, %s342
        %s344 = smul.addr %s343, 8
        %s345 = scalar_lea.vmem %s0, %s344
        %s346 = smul.u32 16, %s24
      $region44: #{tpu_custom_call.1} parent=39 // pred_fallthru
        _
      // Predicated region
      $region45: #{tpu_custom_call.1} parent=39 // pred_check
        %p347 = pneg %p85
      $region46: #{tpu_custom_call.1} parent=39 // pred_check_branch
        %349 = sbr.rel (%p347) target = $region48
      $region47: #{tpu_custom_call.1} parent=39 // pred_region
        %s350 = smul.u32 16, %s25
        %p351 = scmp.lt.s32.totalorder %s23, 1
        %s352 = scalar_select %p351, %s23, 1
        %p353 = scmp.lt.s32.totalorder %s350, 31
        %s354 = scalar_select %p353, %s350, 31
        %s355 = smul.addr %s352, 32
        %s356 = sadd.s32 %s354, %s355
        %s357 = smul.addr %s356, 8
        %s358 = scalar_lea.vmem %s1, %s357
        %s359 = smul.u32 16, %s25
      $region48: #{tpu_custom_call.1} parent=39 // pred_fallthru
        _
      // Predicated region
      $region49: #{tpu_custom_call.1} parent=39 // pred_check
        %p360 = pneg %p111
      $region50: #{tpu_custom_call.1} parent=39 // pred_check_branch
        %362 = sbr.rel (%p360) target = $region52
      $region51: #{tpu_custom_call.1} parent=39 // pred_region
        %p363 = scmp.lt.s32.totalorder %s23, 1
        %s364 = scalar_select %p363, %s23, 1
        %s365 = scalar_lea.vmem %s2, %s364
      $region52: #{tpu_custom_call.1} parent=39 // pred_fallthru
        _
      // Predicated region
      $region53: #{tpu_custom_call.1} parent=39 // pred_check
        %p366 = pneg %p137
      $region54: #{tpu_custom_call.1} parent=39 // pred_check_branch
        %368 = sbr.rel (%p366) target = $region56
      $region55: #{tpu_custom_call.1} parent=39 // pred_region
        %p369 = scmp.lt.s32.totalorder %s23, 1
        %s370 = scalar_select %p369, %s23, 1
        %s371 = scalar_lea.vmem %s3, %s370
      $region56: #{tpu_custom_call.1} parent=39 // pred_fallthru
        _
    $region40: #{tpu_custom_call.1} parent=5 // pred_fallthru
      _
    %p372 = scmp.le.s32.totalorder 1, %s16
    %p373 = scmp.lt.s32.totalorder %s16, 9
    %p374 = pnand %p372, %p373
    %p375 = pneg %p374
    // Predicated region
    $region57: #{tpu_custom_call.1} parent=5 // pred_check
      _
    $region58: #{tpu_custom_call.1} parent=5 // pred_check_branch
      %377 = sbr.rel (%p374) target = $region60
    $region59: #{tpu_custom_call.1} parent=5 // pred_region
      %s378 = ssub.s32 %s16, 1
      %s379 = smul.u32 16, %s27
      %p380 = scmp.lt.s32.totalorder %s26, 1
      %s381 = scalar_select %p380, %s26, 1
      %p382 = scmp.lt.s32.totalorder %s379, 31
      %s383 = scalar_select %p382, %s379, 31
      %s384 = smul.addr %s381, 32
      %s385 = sadd.s32 %s383, %s384
      %s386 = smul.addr %s385, 8
      %s387 = scalar_lea.vmem %s0, %s386
      %p388 = pneg %p63
      %p389 = pneg %p60
      %s390 = smul.u32 16, %s28
      %p391 = scmp.lt.s32.totalorder %s26, 1
      %s392 = scalar_select %p391, %s26, 1
      %p393 = scmp.lt.s32.totalorder %s390, 31
      %s394 = scalar_select %p393, %s390, 31
      %s395 = smul.addr %s392, 32
      %s396 = sadd.s32 %s394, %s395
      %s397 = smul.addr %s396, 8
      %s398 = scalar_lea.vmem %s1, %s397
      %p399 = pneg %p91
      %p400 = pneg %p88
      %p401 = scmp.lt.s32.totalorder %s26, 1
      %s402 = scalar_select %p401, %s26, 1
      %s403 = scalar_lea.vmem %s2, %s402
      %p404 = pneg %p117
      %p405 = pneg %p114
      %p406 = scmp.lt.s32.totalorder %s26, 1
      %s407 = scalar_select %p406, %s26, 1
      %s408 = scalar_lea.vmem %s3, %s407
      %p409 = pneg %p143
      %p410 = pneg %p140
      %p411 = pneg %p164
      %p412 = pneg %p161
      %p413 = pneg %p185
      %p414 = pneg %p182
      %p415 = pneg %p206
      %p416 = pneg %p203
      %p417 = pneg %p227
      %p418 = pneg %p224
      %p419 = pneg %p248
      %p420 = pneg %p245
      %p421 = pneg %p269
      %p422 = pneg %p266
      %p423 = pneg %p297
      %p424 = pneg %p294
      %s425 = smul.u32 16, %s27
      %p426 = scmp.lt.s32.totalorder %s26, 1
      %s427 = scalar_select %p426, %s26, 1
      %p428 = scmp.lt.s32.totalorder %s425, 31
      %s429 = scalar_select %p428, %s425, 31
      %s430 = smul.addr %s427, 32
      %s431 = sadd.s32 %s429, %s430
      %s432 = smul.addr %s431, 8
      %s433 = scalar_lea.vmem %s10, %s432
      %s434 = smul.u32 16, %s27
      %p435 = scmp.lt.s32.totalorder %s26, 1
      %s436 = scalar_select %p435, %s26, 1
      %p437 = scmp.lt.s32.totalorder %s434, 31
      %s438 = scalar_select %p437, %s434, 31
      %s439 = smul.addr %s436, 32
      %s440 = sadd.s32 %s438, %s439
      %s441 = smul.addr %s440, 8
      %s442 = scalar_lea.vmem %s0, %s441
      %s443 = smul.u32 16, %s27
      %s444 = smul.u32 16, %s28
      %p445 = scmp.lt.s32.totalorder %s26, 1
      %s446 = scalar_select %p445, %s26, 1
      %p447 = scmp.lt.s32.totalorder %s444, 31
      %s448 = scalar_select %p447, %s444, 31
      %s449 = smul.addr %s446, 32
      %s450 = sadd.s32 %s448, %s449
      %s451 = smul.addr %s450, 8
      %s452 = scalar_lea.vmem %s1, %s451
      %s453 = smul.u32 16, %s28
      %p454 = scmp.lt.s32.totalorder %s26, 1
      %s455 = scalar_select %p454, %s26, 1
      %s456 = scalar_lea.vmem %s2, %s455
      %p457 = scmp.lt.s32.totalorder %s26, 1
      %s458 = scalar_select %p457, %s26, 1
      %s459 = scalar_lea.vmem %s3, %s458
      %s460 = smul.u32 16, %s27
      %p461 = scmp.lt.s32.totalorder %s26, 1
      %s462 = scalar_select %p461, %s26, 1
      %p463 = scmp.lt.s32.totalorder %s460, 31
      %s464 = scalar_select %p463, %s460, 31
      %s465 = smul.addr %s462, 32
      %s466 = sadd.s32 %s464, %s465
      %s467 = smul.addr %s466, 8
      %s468 = scalar_lea.vmem %s10, %s467
      %s469 = smul.u32 16, %s27
      %v471 = vld [vmem:[%s456] sm:$0x1]
      %v472 = vld [vmem:[%s459] sm:$0x1]
      %p473 = scmp.eq.s32.totalorder %s28, 0
      // Predicated region
      $region61: #{tpu_custom_call.1} parent=59 // pred_check
        %p474 = pneg %p473
      $region62: #{tpu_custom_call.1} parent=59 // pred_check_branch
        %476 = sbr.rel (%p474) target = $region64
      $region63: #{tpu_custom_call.1} parent=59 // pred_region
        %v477 = vld [vmem:[%s442] sm:$0xff]
        %v478 = vld [vmem:[%s442 + $0x8] sm:$0xff]
        %v479 = vld [vmem:[%s442 + $0x10] sm:$0xff]
        %v480 = vld [vmem:[%s442 + $0x18] sm:$0xff]
        %v481 = vld [vmem:[%s442 + $0x20] sm:$0xff]
        %v482 = vld [vmem:[%s442 + $0x28] sm:$0xff]
        %v483 = vld [vmem:[%s442 + $0x30] sm:$0xff]
        %v484 = vld [vmem:[%s442 + $0x38] sm:$0xff]
        %v485 = vld [vmem:[%s442 + $0x40] sm:$0xff]
        %v486 = vld [vmem:[%s442 + $0x48] sm:$0xff]
        %v487 = vld [vmem:[%s442 + $0x50] sm:$0xff]
        %v488 = vld [vmem:[%s442 + $0x58] sm:$0xff]
        %v489 = vld [vmem:[%s442 + $0x60] sm:$0xff]
        %v490 = vld [vmem:[%s442 + $0x68] sm:$0xff]
        %v491 = vld [vmem:[%s442 + $0x70] sm:$0xff]
        %v492 = vld [vmem:[%s442 + $0x78] sm:$0xff]
        %v494 = vlaneseq
        %v495 = vshrl.u32 %v494, 7
        %v496 = vsub.s32 0, %v495
        %v497 = vrot.slane %v471, %v496
        %v499 = vmul.f32 %v477, %v497
        %v500 = vmul.f32 %v478, %v497
        %v501 = vmul.f32 %v479, %v497
        %v502 = vmul.f32 %v480, %v497
        %v503 = vmul.f32 %v481, %v497
        %v504 = vmul.f32 %v482, %v497
        %v505 = vmul.f32 %v483, %v497
        %v506 = vmul.f32 %v484, %v497
        %v507 = vmul.f32 %v485, %v497
        %v508 = vmul.f32 %v486, %v497
        %v509 = vmul.f32 %v487, %v497
        %v510 = vmul.f32 %v488, %v497
        %v511 = vmul.f32 %v489, %v497
        %v512 = vmul.f32 %v490, %v497
        %v513 = vmul.f32 %v491, %v497
        %v514 = vmul.f32 %v492, %v497
        %v516 = vlaneseq
        %v517 = vshrl.u32 %v516, 7
        %v518 = vsub.s32 0, %v517
        %v519 = vrot.slane %v472, %v518
        %v521 = vadd.f32 %v499, %v519
        %v522 = vadd.f32 %v500, %v519
        %v523 = vadd.f32 %v501, %v519
        %v524 = vadd.f32 %v502, %v519
        %v525 = vadd.f32 %v503, %v519
        %v526 = vadd.f32 %v504, %v519
        %v527 = vadd.f32 %v505, %v519
        %v528 = vadd.f32 %v506, %v519
        %v529 = vadd.f32 %v507, %v519
        %v530 = vadd.f32 %v508, %v519
        %v531 = vadd.f32 %v509, %v519
        %v532 = vadd.f32 %v510, %v519
        %v533 = vadd.f32 %v511, %v519
        %v534 = vadd.f32 %v512, %v519
        %v535 = vadd.f32 %v513, %v519
        %v536 = vadd.f32 %v514, %v519
        %v537 = vpack.c.bf16 %v522, %v521
        %v538 = vpack.c.bf16 %v524, %v523
        %v539 = vpack.c.bf16 %v526, %v525
        %v540 = vpack.c.bf16 %v528, %v527
        %v541 = vpack.c.bf16 %v530, %v529
        %v542 = vpack.c.bf16 %v532, %v531
        %v543 = vpack.c.bf16 %v534, %v533
        %v544 = vpack.c.bf16 %v536, %v535
        %v545 = vld [vmem:[%s4] sm:$0xf]
        %v546 = vld [vmem:[%s4 + $0x4] sm:$0xf]
        %v547 = vld [vmem:[%s4 + $0x8] sm:$0xf]
        %v548 = vld [vmem:[%s4 + $0xc] sm:$0xf]
        %v549 = vld [vmem:[%s4 + $0x10] sm:$0xf]
        %v550 = vld [vmem:[%s4 + $0x14] sm:$0xf]
        %v551 = vld [vmem:[%s4 + $0x18] sm:$0xf]
        %v552 = vld [vmem:[%s4 + $0x1c] sm:$0xf]
        %v553 = vld [vmem:[%s5] sm:$0x1]
        %v555 = vlaneseq
        %v556 = vshrl.u32 %v555, 7
        %v557 = vsub.s32 0, %v556
        %v558 = vrot.slane %v553, %v557
        %v568 = vunpack.c.l.b16 %v545
        %v569 = vunpack.c.l.b16 %v546
        %v570 = vunpack.c.l.b16 %v547
        %v571 = vunpack.c.l.b16 %v548
        %v572 = vunpack.c.l.b16 %v549
        %v573 = vunpack.c.l.b16 %v550
        %v574 = vunpack.c.l.b16 %v551
        %v575 = vunpack.c.l.b16 %v552
        %v576 = vpack.c.b16 %v569, %v568
        %v577 = vpack.c.b16 %v571, %v570
        %v578 = vpack.c.b16 %v573, %v572
        %v579 = vpack.c.b16 %v575, %v574
        %vm584 = vcmask 523264
        %v586 = vsel %vm584, %v537, 0
        %v589 = vsel %vm584, %v538, 0
        %v592 = vsel %vm584, %v539, 0
        %v595 = vsel %vm584, %v540, 0
        %v598 = vsel %vm584, %v541, 0
        %v601 = vsel %vm584, %v542, 0
        %v604 = vsel %vm584, %v543, 0
        %v607 = vsel %vm584, %v544, 0
        %609 = vmatprep.subr.bf16.mxu0 0
        %610 = vmatpush1.bf16.msra.mxu0 %v576
        %611 = vmatprep.subr.bf16.mxu0 0
        %612 = vmatpush1.bf16.msra.mxu0 %v577
        %613 = vmatprep.subr.bf16.mxu0 0
        %614 = vmatpush1.bf16.msra.mxu0 %v578
        %615 = vmatprep.subr.bf16.mxu0 0
        %616 = vmatpush1.bf16.msra.mxu0 %v579
        %617 = vmatprep.subr.bf16.mxu0 0
        %618 = vmatpush1.bf16.msra.mxu0 0
        %619 = vmatprep.subr.bf16.mxu0 0
        %620 = vmatpush1.bf16.msra.mxu0 0
        %621 = vmatprep.subr.bf16.mxu0 0
        %622 = vmatpush1.bf16.msra.mxu0 0
        %623 = vmatprep.subr.bf16.mxu0 0
        %624 = vmatpush1.bf16.msra.mxu0 0
        %625 = vmatprep.subr.bf16.mxu0 0
        %626 = vmatpush1.bf16.msra.mxu0 0
        %627 = vmatprep.subr.bf16.mxu0 0
        %628 = vmatpush1.bf16.msra.mxu0 0
        %629 = vmatprep.subr.bf16.mxu0 0
        %630 = vmatpush1.bf16.msra.mxu0 0
        %631 = vmatprep.subr.bf16.mxu0 0
        %632 = vmatpush1.bf16.msra.mxu0 0
        %633 = vmatprep.subr.bf16.mxu0 0
        %634 = vmatpush1.bf16.msra.mxu0 0
        %635 = vmatprep.subr.bf16.mxu0 0
        %636 = vmatpush1.bf16.msra.mxu0 0
        %637 = vmatprep.subr.bf16.mxu0 0
        %638 = vmatpush1.bf16.msra.mxu0 0
        %639 = vmatprep.subr.bf16.mxu0 0
        %640 = vmatpush1.bf16.msra.mxu0 0
        %641 = vmatprep.mubr.bf16.mxu0 0
        %642 = vmatmul.mubr.bf16.gmra.mrb[0].mxu0 %v586
        %v643 = vpop.f32.mrb[0].mxu0
        %v644 = vadd.f32 %v558, %v643
        %v645 = vpop.f32.mrb[0].mxu0
        %v646 = vpop.f32.mrb[0].mxu0
        %v647 = vadd.f32 %v558, %v646
        %v648 = vpop.f32.mrb[0].mxu0
        %649 = vmatprep.mubr.bf16.mxu0 0
        %650 = vmatmul.mubr.bf16.gmra.mrb[0].mxu0 %v589
        %v651 = vpop.f32.mrb[0].mxu0
        %v652 = vadd.f32 %v558, %v651
        %v653 = vpop.f32.mrb[0].mxu0
        %v654 = vpop.f32.mrb[0].mxu0
        %v655 = vadd.f32 %v558, %v654
        %v656 = vpop.f32.mrb[0].mxu0
        %657 = vmatprep.mubr.bf16.mxu0 0
        %658 = vmatmul.mubr.bf16.gmra.mrb[0].mxu0 %v592
        %v659 = vpop.f32.mrb[0].mxu0
        %v660 = vadd.f32 %v558, %v659
        %v661 = vpop.f32.mrb[0].mxu0
        %v662 = vpop.f32.mrb[0].mxu0
        %v663 = vadd.f32 %v558, %v662
        %v664 = vpop.f32.mrb[0].mxu0
        %665 = vmatprep.mubr.bf16.mxu0 0
        %666 = vmatmul.mubr.bf16.gmra.mrb[0].mxu0 %v595
        %v667 = vpop.f32.mrb[0].mxu0
        %v668 = vadd.f32 %v558, %v667
        %v669 = vpop.f32.mrb[0].mxu0
        %v670 = vpop.f32.mrb[0].mxu0
        %v671 = vadd.f32 %v558, %v670
        %v672 = vpop.f32.mrb[0].mxu0
        %673 = vmatprep.mubr.bf16.mxu0 0
        %674 = vmatmul.mubr.bf16.gmra.mrb[0].mxu0 %v598
        %v675 = vpop.f32.mrb[0].mxu0
        %v676 = vadd.f32 %v558, %v675
        %v677 = vpop.f32.mrb[0].mxu0
        %v678 = vpop.f32.mrb[0].mxu0
        %v679 = vadd.f32 %v558, %v678
        %v680 = vpop.f32.mrb[0].mxu0
        %681 = vmatprep.mubr.bf16.mxu0 0
        %682 = vmatmul.mubr.bf16.gmra.mrb[0].mxu0 %v601
        %v683 = vpop.f32.mrb[0].mxu0
        %v684 = vadd.f32 %v558, %v683
        %v685 = vpop.f32.mrb[0].mxu0
        %v686 = vpop.f32.mrb[0].mxu0
        %v687 = vadd.f32 %v558, %v686
        %v688 = vpop.f32.mrb[0].mxu0
        %689 = vmatprep.mubr.bf16.mxu0 0
        %690 = vmatmul.mubr.bf16.gmra.mrb[0].mxu0 %v604
        %v691 = vpop.f32.mrb[0].mxu0
        %v692 = vadd.f32 %v558, %v691
        %v693 = vpop.f32.mrb[0].mxu0
        %v694 = vpop.f32.mrb[0].mxu0
        %v695 = vadd.f32 %v558, %v694
        %v696 = vpop.f32.mrb[0].mxu0
        %697 = vmatprep.mubr.bf16.mxu0 0
        %698 = vmatmul.mubr.bf16.gmra.mrb[0].mxu0 %v607
        %v699 = vpop.f32.mrb[0].mxu0
        %v700 = vadd.f32 %v558, %v699
        %v701 = vpop.f32.mrb[0].mxu0
        %v702 = vpop.f32.mrb[0].mxu0
        %v703 = vadd.f32 %v558, %v702
        %v704 = vpop.f32.mrb[0].mxu0
        %705 = vdwg.mxu0
        %v706 = vpack.c.bf16 %v647, %v644
        %v707 = vpack.c.bf16 %v655, %v652
        %v708 = vpack.c.bf16 %v663, %v660
        %v709 = vpack.c.bf16 %v671, %v668
        %v710 = vpack.c.bf16 %v679, %v676
        %v711 = vpack.c.bf16 %v687, %v684
        %v712 = vpack.c.bf16 %v695, %v692
        %v713 = vpack.c.bf16 %v703, %v700
        %714 = vst.msk [vmem:[#allocation2] sm:$0xff] %vm584, %v706
        %715 = vst.msk [vmem:[#allocation2 + $0x8] sm:$0xff] %vm584, %v707
        %716 = vst.msk [vmem:[#allocation2 + $0x10] sm:$0xff] %vm584, %v708
        %717 = vst.msk [vmem:[#allocation2 + $0x18] sm:$0xff] %vm584, %v709
        %718 = vst.msk [vmem:[#allocation2 + $0x20] sm:$0xff] %vm584, %v710
        %719 = vst.msk [vmem:[#allocation2 + $0x28] sm:$0xff] %vm584, %v711
        %720 = vst.msk [vmem:[#allocation2 + $0x30] sm:$0xff] %vm584, %v712
        %721 = vst.msk [vmem:[#allocation2 + $0x38] sm:$0xff] %vm584, %v713
        %vm722 = vcmask 7168
        %723 = vst.msk [vmem:[#allocation3] sm:$0xff] %vm722, -inf
        %724 = vst.msk [vmem:[#allocation3 + $0x8] sm:$0xff] %vm722, -inf
        %725 = vst.msk [vmem:[#allocation3 + $0x10] sm:$0xff] %vm722, -inf
        %726 = vst.msk [vmem:[#allocation3 + $0x18] sm:$0xff] %vm722, -inf
        %727 = vst.msk [vmem:[#allocation3 + $0x20] sm:$0xff] %vm722, -inf
        %728 = vst.msk [vmem:[#allocation3 + $0x28] sm:$0xff] %vm722, -inf
        %729 = vst.msk [vmem:[#allocation3 + $0x30] sm:$0xff] %vm722, -inf
        %730 = vst.msk [vmem:[#allocation3 + $0x38] sm:$0xff] %vm722, -inf
        %731 = vst.msk [vmem:[#allocation3 + $0x40] sm:$0xff] %vm722, -inf
        %732 = vst.msk [vmem:[#allocation3 + $0x48] sm:$0xff] %vm722, -inf
        %733 = vst.msk [vmem:[#allocation3 + $0x50] sm:$0xff] %vm722, -inf
        %734 = vst.msk [vmem:[#allocation3 + $0x58] sm:$0xff] %vm722, -inf
        %735 = vst.msk [vmem:[#allocation3 + $0x60] sm:$0xff] %vm722, -inf
        %736 = vst.msk [vmem:[#allocation3 + $0x68] sm:$0xff] %vm722, -inf
        %737 = vst.msk [vmem:[#allocation3 + $0x70] sm:$0xff] %vm722, -inf
        %738 = vst.msk [vmem:[#allocation3 + $0x78] sm:$0xff] %vm722, -inf
        %739 = vst.msk [vmem:[#allocation4] sm:$0xff] %vm722, 0.0
        %740 = vst.msk [vmem:[#allocation4 + $0x8] sm:$0xff] %vm722, 0.0
        %741 = vst.msk [vmem:[#allocation4 + $0x10] sm:$0xff] %vm722, 0.0
        %742 = vst.msk [vmem:[#allocation4 + $0x18] sm:$0xff] %vm722, 0.0
        %743 = vst.msk [vmem:[#allocation4 + $0x20] sm:$0xff] %vm722, 0.0
        %744 = vst.msk [vmem:[#allocation4 + $0x28] sm:$0xff] %vm722, 0.0
        %745 = vst.msk [vmem:[#allocation4 + $0x30] sm:$0xff] %vm722, 0.0
        %746 = vst.msk [vmem:[#allocation4 + $0x38] sm:$0xff] %vm722, 0.0
        %747 = vst.msk [vmem:[#allocation4 + $0x40] sm:$0xff] %vm722, 0.0
        %748 = vst.msk [vmem:[#allocation4 + $0x48] sm:$0xff] %vm722, 0.0
        %749 = vst.msk [vmem:[#allocation4 + $0x50] sm:$0xff] %vm722, 0.0
        %750 = vst.msk [vmem:[#allocation4 + $0x58] sm:$0xff] %vm722, 0.0
        %751 = vst.msk [vmem:[#allocation4 + $0x60] sm:$0xff] %vm722, 0.0
        %752 = vst.msk [vmem:[#allocation4 + $0x68] sm:$0xff] %vm722, 0.0
        %753 = vst.msk [vmem:[#allocation4 + $0x70] sm:$0xff] %vm722, 0.0
        %754 = vst.msk [vmem:[#allocation4 + $0x78] sm:$0xff] %vm722, 0.0
        %755 = vst.msk [vmem:[#allocation5] sm:$0xff] %vm584, 0.0
        %756 = vst.msk [vmem:[#allocation5 + $0x8] sm:$0xff] %vm584, 0.0
        %757 = vst.msk [vmem:[#allocation5 + $0x10] sm:$0xff] %vm584, 0.0
        %758 = vst.msk [vmem:[#allocation5 + $0x18] sm:$0xff] %vm584, 0.0
        %759 = vst.msk [vmem:[#allocation5 + $0x20] sm:$0xff] %vm584, 0.0
        %760 = vst.msk [vmem:[#allocation5 + $0x28] sm:$0xff] %vm584, 0.0
        %761 = vst.msk [vmem:[#allocation5 + $0x30] sm:$0xff] %vm584, 0.0
        %762 = vst.msk [vmem:[#allocation5 + $0x38] sm:$0xff] %vm584, 0.0
        %763 = vst.msk [vmem:[#allocation5 + $0x40] sm:$0xff] %vm584, 0.0
        %764 = vst.msk [vmem:[#allocation5 + $0x48] sm:$0xff] %vm584, 0.0
        %765 = vst.msk [vmem:[#allocation5 + $0x50] sm:$0xff] %vm584, 0.0
        %766 = vst.msk [vmem:[#allocation5 + $0x58] sm:$0xff] %vm584, 0.0
        %767 = vst.msk [vmem:[#allocation5 + $0x60] sm:$0xff] %vm584, 0.0
        %768 = vst.msk [vmem:[#allocation5 + $0x68] sm:$0xff] %vm584, 0.0
        %769 = vst.msk [vmem:[#allocation5 + $0x70] sm:$0xff] %vm584, 0.0
        %770 = vst.msk [vmem:[#allocation5 + $0x78] sm:$0xff] %vm584, 0.0
      $region64: #{tpu_custom_call.1} parent=59 // pred_fallthru
        _
      %v771 = vld [vmem:[%s452] sm:$0xff]
      %v772 = vld [vmem:[%s452 + $0x8] sm:$0xff]
      %v773 = vld [vmem:[%s452 + $0x10] sm:$0xff]
      %v774 = vld [vmem:[%s452 + $0x18] sm:$0xff]
      %v775 = vld [vmem:[%s452 + $0x20] sm:$0xff]
      %v776 = vld [vmem:[%s452 + $0x28] sm:$0xff]
      %v777 = vld [vmem:[%s452 + $0x30] sm:$0xff]
      %v778 = vld [vmem:[%s452 + $0x38] sm:$0xff]
      %v779 = vld [vmem:[%s452 + $0x40] sm:$0xff]
      %v780 = vld [vmem:[%s452 + $0x48] sm:$0xff]
      %v781 = vld [vmem:[%s452 + $0x50] sm:$0xff]
      %v782 = vld [vmem:[%s452 + $0x58] sm:$0xff]
      %v783 = vld [vmem:[%s452 + $0x60] sm:$0xff]
      %v784 = vld [vmem:[%s452 + $0x68] sm:$0xff]
      %v785 = vld [vmem:[%s452 + $0x70] sm:$0xff]
      %v786 = vld [vmem:[%s452 + $0x78] sm:$0xff]
      %v788 = vlaneseq
      %v789 = vshrl.u32 %v788, 7
      %v790 = vsub.s32 0, %v789
      %v791 = vrot.slane %v471, %v790
      %v793 = vmul.f32 %v771, %v791
      %v794 = vmul.f32 %v772, %v791
      %v795 = vmul.f32 %v773, %v791
      %v796 = vmul.f32 %v774, %v791
      %v797 = vmul.f32 %v775, %v791
      %v798 = vmul.f32 %v776, %v791
      %v799 = vmul.f32 %v777, %v791
      %v800 = vmul.f32 %v778, %v791
      %v801 = vmul.f32 %v779, %v791
      %v802 = vmul.f32 %v780, %v791
      %v803 = vmul.f32 %v781, %v791
      %v804 = vmul.f32 %v782, %v791
      %v805 = vmul.f32 %v783, %v791
      %v806 = vmul.f32 %v784, %v791
      %v807 = vmul.f32 %v785, %v791
      %v808 = vmul.f32 %v786, %v791
      %v810 = vlaneseq
      %v811 = vshrl.u32 %v810, 7
      %v812 = vsub.s32 0, %v811
      %v813 = vrot.slane %v472, %v812
      %v815 = vadd.f32 %v793, %v813
      %v816 = vadd.f32 %v794, %v813
      %v817 = vadd.f32 %v795, %v813
      %v818 = vadd.f32 %v796, %v813
      %v819 = vadd.f32 %v797, %v813
      %v820 = vadd.f32 %v798, %v813
      %v821 = vadd.f32 %v799, %v813
      %v822 = vadd.f32 %v800, %v813
      %v823 = vadd.f32 %v801, %v813
      %v824 = vadd.f32 %v802, %v813
      %v825 = vadd.f32 %v803, %v813
      %v826 = vadd.f32 %v804, %v813
      %v827 = vadd.f32 %v805, %v813
      %v828 = vadd.f32 %v806, %v813
      %v829 = vadd.f32 %v807, %v813
      %v830 = vadd.f32 %v808, %v813
      %v831 = vpack.c.bf16 %v816, %v815
      %v832 = vpack.c.bf16 %v818, %v817
      %v833 = vpack.c.bf16 %v820, %v819
      %v834 = vpack.c.bf16 %v822, %v821
      %v835 = vpack.c.bf16 %v824, %v823
      %v836 = vpack.c.bf16 %v826, %v825
      %v837 = vpack.c.bf16 %v828, %v827
      %v838 = vpack.c.bf16 %v830, %v829
      %v839 = vld [vmem:[%s6] sm:$0xf]
      %v840 = vld [vmem:[%s6 + $0x4] sm:$0xf]
      %v841 = vld [vmem:[%s6 + $0x8] sm:$0xf]
      %v842 = vld [vmem:[%s6 + $0xc] sm:$0xf]
      %v843 = vld [vmem:[%s6 + $0x10] sm:$0xf]
      %v844 = vld [vmem:[%s6 + $0x14] sm:$0xf]
      %v845 = vld [vmem:[%s6 + $0x18] sm:$0xf]
      %v846 = vld [vmem:[%s6 + $0x1c] sm:$0xf]
      %v847 = vld [vmem:[%s7] sm:$0x1]
      %v849 = vlaneseq
      %v850 = vshrl.u32 %v849, 7
      %v851 = vsub.s32 0, %v850
      %v852 = vrot.slane %v847, %v851
      %v862 = vunpack.c.l.b16 %v839
      %v863 = vunpack.c.l.b16 %v840
      %v864 = vunpack.c.l.b16 %v841
      %v865 = vunpack.c.l.b16 %v842
      %v866 = vunpack.c.l.b16 %v843
      %v867 = vunpack.c.l.b16 %v844
      %v868 = vunpack.c.l.b16 %v845
      %v869 = vunpack.c.l.b16 %v846
      %v870 = vpack.c.b16 %v863, %v862
      %v871 = vpack.c.b16 %v865, %v864
      %v872 = vpack.c.b16 %v867, %v866
      %v873 = vpack.c.b16 %v869, %v868
      %vm878 = vcmask 523264
      %v880 = vsel %vm878, %v831, 0
      %v883 = vsel %vm878, %v832, 0
      %v886 = vsel %vm878, %v833, 0
      %v889 = vsel %vm878, %v834, 0
      %v892 = vsel %vm878, %v835, 0
      %v895 = vsel %vm878, %v836, 0
      %v898 = vsel %vm878, %v837, 0
      %v901 = vsel %vm878, %v838, 0
      %903 = vmatprep.subr.bf16.mxu0 0
      %904 = vmatpush1.bf16.msra.mxu0 %v870
      %905 = vmatprep.subr.bf16.mxu0 0
      %906 = vmatpush1.bf16.msra.mxu0 %v871
      %907 = vmatprep.subr.bf16.mxu0 0
      %908 = vmatpush1.bf16.msra.mxu0 %v872
      %909 = vmatprep.subr.bf16.mxu0 0
      %910 = vmatpush1.bf16.msra.mxu0 %v873
      %911 = vmatprep.subr.bf16.mxu0 0
      %912 = vmatpush1.bf16.msra.mxu0 0
      %913 = vmatprep.subr.bf16.mxu0 0
      %914 = vmatpush1.bf16.msra.mxu0 0
      %915 = vmatprep.subr.bf16.mxu0 0
      %916 = vmatpush1.bf16.msra.mxu0 0
      %917 = vmatprep.subr.bf16.mxu0 0
      %918 = vmatpush1.bf16.msra.mxu0 0
      %919 = vmatprep.subr.bf16.mxu0 0
      %920 = vmatpush1.bf16.msra.mxu0 0
      %921 = vmatprep.subr.bf16.mxu0 0
      %922 = vmatpush1.bf16.msra.mxu0 0
      %923 = vmatprep.subr.bf16.mxu0 0
      %924 = vmatpush1.bf16.msra.mxu0 0
      %925 = vmatprep.subr.bf16.mxu0 0
      %926 = vmatpush1.bf16.msra.mxu0 0
      %927 = vmatprep.subr.bf16.mxu0 0
      %928 = vmatpush1.bf16.msra.mxu0 0
      %929 = vmatprep.subr.bf16.mxu0 0
      %930 = vmatpush1.bf16.msra.mxu0 0
      %931 = vmatprep.subr.bf16.mxu0 0
      %932 = vmatpush1.bf16.msra.mxu0 0
      %933 = vmatprep.subr.bf16.mxu0 0
      %934 = vmatpush1.bf16.msra.mxu0 0
      %935 = vmatprep.mubr.bf16.mxu0 0
      %936 = vmatmul.mubr.bf16.gmra.mrb[0].mxu0 %v880
      %v937 = vpop.f32.mrb[0].mxu0
      %v938 = vadd.f32 %v852, %v937
      %v939 = vpop.f32.mrb[0].mxu0
      %v940 = vpop.f32.mrb[0].mxu0
      %v941 = vadd.f32 %v852, %v940
      %v942 = vpop.f32.mrb[0].mxu0
      %943 = vmatprep.mubr.bf16.mxu0 0
      %944 = vmatmul.mubr.bf16.gmra.mrb[0].mxu0 %v883
      %v945 = vpop.f32.mrb[0].mxu0
      %v946 = vadd.f32 %v852, %v945
      %v947 = vpop.f32.mrb[0].mxu0
      %v948 = vpop.f32.mrb[0].mxu0
      %v949 = vadd.f32 %v852, %v948
      %v950 = vpop.f32.mrb[0].mxu0
      %951 = vmatprep.mubr.bf16.mxu0 0
      %952 = vmatmul.mubr.bf16.gmra.mrb[0].mxu0 %v886
      %v953 = vpop.f32.mrb[0].mxu0
      %v954 = vadd.f32 %v852, %v953
      %v955 = vpop.f32.mrb[0].mxu0
      %v956 = vpop.f32.mrb[0].mxu0
      %v957 = vadd.f32 %v852, %v956
      %v958 = vpop.f32.mrb[0].mxu0
      %959 = vmatprep.mubr.bf16.mxu0 0
      %960 = vmatmul.mubr.bf16.gmra.mrb[0].mxu0 %v889
      %v961 = vpop.f32.mrb[0].mxu0
      %v962 = vadd.f32 %v852, %v961
      %v963 = vpop.f32.mrb[0].mxu0
      %v964 = vpop.f32.mrb[0].mxu0
      %v965 = vadd.f32 %v852, %v964
      %v966 = vpop.f32.mrb[0].mxu0
      %967 = vmatprep.mubr.bf16.mxu0 0
      %968 = vmatmul.mubr.bf16.gmra.mrb[0].mxu0 %v892
      %v969 = vpop.f32.mrb[0].mxu0
      %v970 = vadd.f32 %v852, %v969
      %v971 = vpop.f32.mrb[0].mxu0
      %v972 = vpop.f32.mrb[0].mxu0
      %v973 = vadd.f32 %v852, %v972
      %v974 = vpop.f32.mrb[0].mxu0
      %975 = vmatprep.mubr.bf16.mxu0 0
      %976 = vmatmul.mubr.bf16.gmra.mrb[0].mxu0 %v895
      %v977 = vpop.f32.mrb[0].mxu0
      %v978 = vadd.f32 %v852, %v977
      %v979 = vpop.f32.mrb[0].mxu0
      %v980 = vpop.f32.mrb[0].mxu0
      %v981 = vadd.f32 %v852, %v980
      %v982 = vpop.f32.mrb[0].mxu0
      %983 = vmatprep.mubr.bf16.mxu0 0
      %984 = vmatmul.mubr.bf16.gmra.mrb[0].mxu0 %v898
      %v985 = vpop.f32.mrb[0].mxu0
      %v986 = vadd.f32 %v852, %v985
      %v987 = vpop.f32.mrb[0].mxu0
      %v988 = vpop.f32.mrb[0].mxu0
      %v989 = vadd.f32 %v852, %v988
      %v990 = vpop.f32.mrb[0].mxu0
      %991 = vmatprep.mubr.bf16.mxu0 0
      %992 = vmatmul.mubr.bf16.gmra.mrb[0].mxu0 %v901
      %v993 = vpop.f32.mrb[0].mxu0
      %v994 = vadd.f32 %v852, %v993
      %v995 = vpop.f32.mrb[0].mxu0
      %v996 = vpop.f32.mrb[0].mxu0
      %v997 = vadd.f32 %v852, %v996
      %v998 = vpop.f32.mrb[0].mxu0
      %999 = vdwg.mxu0
      %v1000 = vpack.c.bf16 %v941, %v938
      %v1001 = vpack.c.bf16 %v949, %v946
      %v1002 = vpack.c.bf16 %v957, %v954
      %v1003 = vpack.c.bf16 %v965, %v962
      %v1004 = vpack.c.bf16 %v973, %v970
      %v1005 = vpack.c.bf16 %v981, %v978
      %v1006 = vpack.c.bf16 %v989, %v986
      %v1007 = vpack.c.bf16 %v997, %v994
      %v1008 = vld [vmem:[#allocation2] sm:$0xff]
      %v1009 = vld [vmem:[#allocation2 + $0x8] sm:$0xff]
      %v1010 = vld [vmem:[#allocation2 + $0x10] sm:$0xff]
      %v1011 = vld [vmem:[#allocation2 + $0x18] sm:$0xff]
      %v1012 = vld [vmem:[#allocation2 + $0x20] sm:$0xff]
      %v1013 = vld [vmem:[#allocation2 + $0x28] sm:$0xff]
      %v1014 = vld [vmem:[#allocation2 + $0x30] sm:$0xff]
      %v1015 = vld [vmem:[#allocation2 + $0x38] sm:$0xff]
      %v1017 = vsel %vm878, %v1008, 0
      %v1020 = vsel %vm878, %v1009, 0
      %v1023 = vsel %vm878, %v1010, 0
      %v1026 = vsel %vm878, %v1011, 0
      %v1029 = vsel %vm878, %v1012, 0
      %v1032 = vsel %vm878, %v1013, 0
      %v1035 = vsel %vm878, %v1014, 0
      %v1038 = vsel %vm878, %v1015, 0
      %v1041 = vsel %vm878, %v1000, 0
      %v1044 = vsel %vm878, %v1001, 0
      %v1047 = vsel %vm878, %v1002, 0
      %v1050 = vsel %vm878, %v1003, 0
      %v1053 = vsel %vm878, %v1004, 0
      %v1056 = vsel %vm878, %v1005, 0
      %v1059 = vsel %vm878, %v1006, 0
      %v1062 = vsel %vm878, %v1007, 0
      %1064 = vmatprep.subr.bf16.mxu0 0
      %1065 = vmatpush1.bf16.xpose.msra.mxu0 %v1041
      %1066 = vmatprep.subr.bf16.mxu0 0
      %1067 = vmatpush1.bf16.xpose.msra.mxu0 %v1044
      %1068 = vmatprep.subr.bf16.mxu0 0
      %1069 = vmatpush1.bf16.xpose.msra.mxu0 %v1047
      %1070 = vmatprep.subr.bf16.mxu0 0
      %1071 = vmatpush1.bf16.xpose.msra.mxu0 %v1050
      %1072 = vmatprep.subr.bf16.mxu0 0
      %1073 = vmatpush1.bf16.xpose.msra.mxu0 %v1053
      %1074 = vmatprep.subr.bf16.mxu0 0
      %1075 = vmatpush1.bf16.xpose.msra.mxu0 %v1056
      %1076 = vmatprep.subr.bf16.mxu0 0
      %1077 = vmatpush1.bf16.xpose.msra.mxu0 %v1059
      %1078 = vmatprep.subr.bf16.mxu0 0
      %1079 = vmatpush1.bf16.xpose.msra.mxu0 %v1062
      %1080 = vmatprep.subr.bf16.mxu0 0
      %1081 = vmatpush1.bf16.xpose.msra.mxu0 0
      %1082 = vmatprep.subr.bf16.mxu0 0
      %1083 = vmatpush1.bf16.xpose.msra.mxu0 0
      %1084 = vmatprep.subr.bf16.mxu0 0
      %1085 = vmatpush1.bf16.xpose.msra.mxu0 0
      %1086 = vmatprep.subr.bf16.mxu0 0
      %1087 = vmatpush1.bf16.xpose.msra.mxu0 0
      %1088 = vmatprep.subr.bf16.mxu0 0
      %1089 = vmatpush1.bf16.xpose.msra.mxu0 0
      %1090 = vmatprep.subr.bf16.mxu0 0
      %1091 = vmatpush1.bf16.xpose.msra.mxu0 0
      %1092 = vmatprep.subr.bf16.mxu0 0
      %1093 = vmatpush1.bf16.xpose.msra.mxu0 0
      %1094 = vmatprep.subr.bf16.mxu0 0
      %1095 = vmatpush1.bf16.xpose.msra.mxu0 0
      %1096 = vmatprep.mubr.bf16.mxu0 0
      %1097 = vmatmul.mubr.bf16.gmra.mrb[0].mxu0 %v1017
      %v1098 = vpop.f32.mrb[0].mxu0
      %v1099 = vadd.f32 0.0, %v1098
      %v1100 = vpop.f32.mrb[0].mxu0
      %v1101 = vpop.f32.mrb[0].mxu0
      %v1102 = vadd.f32 0.0, %v1101
      %v1103 = vpop.f32.mrb[0].mxu0
      %1104 = vmatprep.mubr.bf16.mxu0 0
      %1105 = vmatmul.mubr.bf16.gmra.mrb[0].mxu0 %v1020
      %v1106 = vpop.f32.mrb[0].mxu0
      %v1107 = vadd.f32 0.0, %v1106
      %v1108 = vpop.f32.mrb[0].mxu0
      %v1109 = vpop.f32.mrb[0].mxu0
      %v1110 = vadd.f32 0.0, %v1109
      %v1111 = vpop.f32.mrb[0].mxu0
      %1112 = vmatprep.mubr.bf16.mxu0 0
      %1113 = vmatmul.mubr.bf16.gmra.mrb[0].mxu0 %v1023
      %v1114 = vpop.f32.mrb[0].mxu0
      %v1115 = vadd.f32 0.0, %v1114
      %v1116 = vpop.f32.mrb[0].mxu0
      %v1117 = vpop.f32.mrb[0].mxu0
      %v1118 = vadd.f32 0.0, %v1117
      %v1119 = vpop.f32.mrb[0].mxu0
      %1120 = vmatprep.mubr.bf16.mxu0 0
      %1121 = vmatmul.mubr.bf16.gmra.mrb[0].mxu0 %v1026
      %v1122 = vpop.f32.mrb[0].mxu0
      %v1123 = vadd.f32 0.0, %v1122
      %v1124 = vpop.f32.mrb[0].mxu0
      %v1125 = vpop.f32.mrb[0].mxu0
      %v1126 = vadd.f32 0.0, %v1125
      %v1127 = vpop.f32.mrb[0].mxu0
      %1128 = vmatprep.mubr.bf16.mxu0 0
      %1129 = vmatmul.mubr.bf16.gmra.mrb[0].mxu0 %v1029
      %v1130 = vpop.f32.mrb[0].mxu0
      %v1131 = vadd.f32 0.0, %v1130
      %v1132 = vpop.f32.mrb[0].mxu0
      %v1133 = vpop.f32.mrb[0].mxu0
      %v1134 = vadd.f32 0.0, %v1133
      %v1135 = vpop.f32.mrb[0].mxu0
      %1136 = vmatprep.mubr.bf16.mxu0 0
      %1137 = vmatmul.mubr.bf16.gmra.mrb[0].mxu0 %v1032
      %v1138 = vpop.f32.mrb[0].mxu0
      %v1139 = vadd.f32 0.0, %v1138
      %v1140 = vpop.f32.mrb[0].mxu0
      %v1141 = vpop.f32.mrb[0].mxu0
      %v1142 = vadd.f32 0.0, %v1141
      %v1143 = vpop.f32.mrb[0].mxu0
      %1144 = vmatprep.mubr.bf16.mxu0 0
      %1145 = vmatmul.mubr.bf16.gmra.mrb[0].mxu0 %v1035
      %v1146 = vpop.f32.mrb[0].mxu0
      %v1147 = vadd.f32 0.0, %v1146
      %v1148 = vpop.f32.mrb[0].mxu0
      %v1149 = vpop.f32.mrb[0].mxu0
      %v1150 = vadd.f32 0.0, %v1149
      %v1151 = vpop.f32.mrb[0].mxu0
      %1152 = vmatprep.mubr.bf16.mxu0 0
      %1153 = vmatmul.mubr.bf16.gmra.mrb[0].mxu0 %v1038
      %v1154 = vpop.f32.mrb[0].mxu0
      %v1155 = vadd.f32 0.0, %v1154
      %v1156 = vpop.f32.mrb[0].mxu0
      %v1157 = vpop.f32.mrb[0].mxu0
      %v1158 = vadd.f32 0.0, %v1157
      %v1159 = vpop.f32.mrb[0].mxu0
      %1160 = vdwg.mxu0
      %v1161 = vld [vmem:[#allocation3] sm:$0xff]
      %v1162 = vld [vmem:[#allocation3 + $0x8] sm:$0xff]
      %v1163 = vld [vmem:[#allocation3 + $0x10] sm:$0xff]
      %v1164 = vld [vmem:[#allocation3 + $0x18] sm:$0xff]
      %v1165 = vld [vmem:[#allocation3 + $0x20] sm:$0xff]
      %v1166 = vld [vmem:[#allocation3 + $0x28] sm:$0xff]
      %v1167 = vld [vmem:[#allocation3 + $0x30] sm:$0xff]
      %v1168 = vld [vmem:[#allocation3 + $0x38] sm:$0xff]
      %v1169 = vld [vmem:[#allocation3 + $0x40] sm:$0xff]
      %v1170 = vld [vmem:[#allocation3 + $0x48] sm:$0xff]
      %v1171 = vld [vmem:[#allocation3 + $0x50] sm:$0xff]
      %v1172 = vld [vmem:[#allocation3 + $0x58] sm:$0xff]
      %v1173 = vld [vmem:[#allocation3 + $0x60] sm:$0xff]
      %v1174 = vld [vmem:[#allocation3 + $0x68] sm:$0xff]
      %v1175 = vld [vmem:[#allocation3 + $0x70] sm:$0xff]
      %v1176 = vld [vmem:[#allocation3 + $0x78] sm:$0xff]
      %1177 = vmax.xlane.f32.xlu0 %v1099
      %v1178 = vpop.xlane.xlu0 %1177
      %1179 = vmax.xlane.f32.xlu0 %v1102
      %v1180 = vpop.xlane.xlu0 %1179
      %1181 = vmax.xlane.f32.xlu0 %v1107
      %v1182 = vpop.xlane.xlu0 %1181
      %1183 = vmax.xlane.f32.xlu0 %v1110
      %v1184 = vpop.xlane.xlu0 %1183
      %1185 = vmax.xlane.f32.xlu0 %v1115
      %v1186 = vpop.xlane.xlu0 %1185
      %1187 = vmax.xlane.f32.xlu0 %v1118
      %v1188 = vpop.xlane.xlu0 %1187
      %1189 = vmax.xlane.f32.xlu0 %v1123
      %v1190 = vpop.xlane.xlu0 %1189
      %1191 = vmax.xlane.f32.xlu0 %v1126
      %v1192 = vpop.xlane.xlu0 %1191
      %1193 = vmax.xlane.f32.xlu0 %v1131
      %v1194 = vpop.xlane.xlu0 %1193
      %1195 = vmax.xlane.f32.xlu0 %v1134
      %v1196 = vpop.xlane.xlu0 %1195
      %1197 = vmax.xlane.f32.xlu0 %v1139
      %v1198 = vpop.xlane.xlu0 %1197
      %1199 = vmax.xlane.f32.xlu0 %v1142
      %v1200 = vpop.xlane.xlu0 %1199
      %1201 = vmax.xlane.f32.xlu0 %v1147
      %v1202 = vpop.xlane.xlu0 %1201
      %1203 = vmax.xlane.f32.xlu0 %v1150
      %v1204 = vpop.xlane.xlu0 %1203
      %1205 = vmax.xlane.f32.xlu0 %v1155
      %v1206 = vpop.xlane.xlu0 %1205
      %1207 = vmax.xlane.f32.xlu0 %v1158
      %v1208 = vpop.xlane.xlu0 %1207
      %v1209 = vmax.f32 %v1161, %v1178
      %v1210 = vmax.f32 %v1162, %v1180
      %v1211 = vmax.f32 %v1163, %v1182
      %v1212 = vmax.f32 %v1164, %v1184
      %v1213 = vmax.f32 %v1165, %v1186
      %v1214 = vmax.f32 %v1166, %v1188
      %v1215 = vmax.f32 %v1167, %v1190
      %v1216 = vmax.f32 %v1168, %v1192
      %v1217 = vmax.f32 %v1169, %v1194
      %v1218 = vmax.f32 %v1170, %v1196
      %v1219 = vmax.f32 %v1171, %v1198
      %v1220 = vmax.f32 %v1172, %v1200
      %v1221 = vmax.f32 %v1173, %v1202
      %v1222 = vmax.f32 %v1174, %v1204
      %v1223 = vmax.f32 %v1175, %v1206
      %v1224 = vmax.f32 %v1176, %v1208
      %v1225 = vsub.f32 %v1161, %v1209
      %v1226 = vsub.f32 %v1162, %v1210
      %v1227 = vsub.f32 %v1163, %v1211
      %v1228 = vsub.f32 %v1164, %v1212
      %v1229 = vsub.f32 %v1165, %v1213
      %v1230 = vsub.f32 %v1166, %v1214
      %v1231 = vsub.f32 %v1167, %v1215
      %v1232 = vsub.f32 %v1168, %v1216
      %v1233 = vsub.f32 %v1169, %v1217
      %v1234 = vsub.f32 %v1170, %v1218
      %v1235 = vsub.f32 %v1171, %v1219
      %v1236 = vsub.f32 %v1172, %v1220
      %v1237 = vsub.f32 %v1173, %v1221
      %v1238 = vsub.f32 %v1174, %v1222
      %v1239 = vsub.f32 %v1175, %v1223
      %v1240 = vsub.f32 %v1176, %v1224
      %v1241 = vmul.f32 %v1225, 1.442695
      %v1242 = vpow.pop %v1241
      %v1243 = vmul.f32 %v1226, 1.442695
      %v1244 = vpow.pop %v1243
      %v1245 = vmul.f32 %v1227, 1.442695
      %v1246 = vpow.pop %v1245
      %v1247 = vmul.f32 %v1228, 1.442695
      %v1248 = vpow.pop %v1247
      %v1249 = vmul.f32 %v1229, 1.442695
      %v1250 = vpow.pop %v1249
      %v1251 = vmul.f32 %v1230, 1.442695
      %v1252 = vpow.pop %v1251
      %v1253 = vmul.f32 %v1231, 1.442695
      %v1254 = vpow.pop %v1253
      %v1255 = vmul.f32 %v1232, 1.442695
      %v1256 = vpow.pop %v1255
      %v1257 = vmul.f32 %v1233, 1.442695
      %v1258 = vpow.pop %v1257
      %v1259 = vmul.f32 %v1234, 1.442695
      %v1260 = vpow.pop %v1259
      %v1261 = vmul.f32 %v1235, 1.442695
      %v1262 = vpow.pop %v1261
      %v1263 = vmul.f32 %v1236, 1.442695
      %v1264 = vpow.pop %v1263
      %v1265 = vmul.f32 %v1237, 1.442695
      %v1266 = vpow.pop %v1265
      %v1267 = vmul.f32 %v1238, 1.442695
      %v1268 = vpow.pop %v1267
      %v1269 = vmul.f32 %v1239, 1.442695
      %v1270 = vpow.pop %v1269
      %v1271 = vmul.f32 %v1240, 1.442695
      %v1272 = vpow.pop %v1271
      %1274 = vset.pattern.permute.xlu0 0
      %1275 = vperm.xlu0 %1274, %v1209
      %v1276 = vpop.permute.xlu0 %1275
      %1279 = vset.pattern.permute.xlu0 0
      %1280 = vperm.xlu0 %1279, %v1210
      %v1281 = vpop.permute.xlu0 %1280
      %1284 = vset.pattern.permute.xlu0 0
      %1285 = vperm.xlu0 %1284, %v1211
      %v1286 = vpop.permute.xlu0 %1285
      %1289 = vset.pattern.permute.xlu0 0
      %1290 = vperm.xlu0 %1289, %v1212
      %v1291 = vpop.permute.xlu0 %1290
      %1294 = vset.pattern.permute.xlu0 0
      %1295 = vperm.xlu0 %1294, %v1213
      %v1296 = vpop.permute.xlu0 %1295
      %1299 = vset.pattern.permute.xlu0 0
      %1300 = vperm.xlu0 %1299, %v1214
      %v1301 = vpop.permute.xlu0 %1300
      %1304 = vset.pattern.permute.xlu0 0
      %1305 = vperm.xlu0 %1304, %v1215
      %v1306 = vpop.permute.xlu0 %1305
      %1309 = vset.pattern.permute.xlu0 0
      %1310 = vperm.xlu0 %1309, %v1216
      %v1311 = vpop.permute.xlu0 %1310
      %1314 = vset.pattern.permute.xlu0 0
      %1315 = vperm.xlu0 %1314, %v1217
      %v1316 = vpop.permute.xlu0 %1315
      %1319 = vset.pattern.permute.xlu0 0
      %1320 = vperm.xlu0 %1319, %v1218
      %v1321 = vpop.permute.xlu0 %1320
      %1324 = vset.pattern.permute.xlu0 0
      %1325 = vperm.xlu0 %1324, %v1219
      %v1326 = vpop.permute.xlu0 %1325
      %1329 = vset.pattern.permute.xlu0 0
      %1330 = vperm.xlu0 %1329, %v1220
      %v1331 = vpop.permute.xlu0 %1330
      %1334 = vset.pattern.permute.xlu0 0
      %1335 = vperm.xlu0 %1334, %v1221
      %v1336 = vpop.permute.xlu0 %1335
      %1339 = vset.pattern.permute.xlu0 0
      %1340 = vperm.xlu0 %1339, %v1222
      %v1341 = vpop.permute.xlu0 %1340
      %1344 = vset.pattern.permute.xlu0 0
      %1345 = vperm.xlu0 %1344, %v1223
      %v1346 = vpop.permute.xlu0 %1345
      %1349 = vset.pattern.permute.xlu0 0
      %1350 = vperm.xlu0 %1349, %v1224
      %v1351 = vpop.permute.xlu0 %1350
      %v1353 = vsub.f32 %v1099, %v1276
      %v1354 = vsub.f32 %v1102, %v1281
      %v1355 = vsub.f32 %v1107, %v1286
      %v1356 = vsub.f32 %v1110, %v1291
      %v1357 = vsub.f32 %v1115, %v1296
      %v1358 = vsub.f32 %v1118, %v1301
      %v1359 = vsub.f32 %v1123, %v1306
      %v1360 = vsub.f32 %v1126, %v1311
      %v1361 = vsub.f32 %v1131, %v1316
      %v1362 = vsub.f32 %v1134, %v1321
      %v1363 = vsub.f32 %v1139, %v1326
      %v1364 = vsub.f32 %v1142, %v1331
      %v1365 = vsub.f32 %v1147, %v1336
      %v1366 = vsub.f32 %v1150, %v1341
      %v1367 = vsub.f32 %v1155, %v1346
      %v1368 = vsub.f32 %v1158, %v1351
      %v1369 = vmul.f32 %v1353, 1.442695
      %v1370 = vpow.pop %v1369
      %v1371 = vmul.f32 %v1354, 1.442695
      %v1372 = vpow.pop %v1371
      %v1373 = vmul.f32 %v1355, 1.442695
      %v1374 = vpow.pop %v1373
      %v1375 = vmul.f32 %v1356, 1.442695
      %v1376 = vpow.pop %v1375
      %v1377 = vmul.f32 %v1357, 1.442695
      %v1378 = vpow.pop %v1377
      %v1379 = vmul.f32 %v1358, 1.442695
      %v1380 = vpow.pop %v1379
      %v1381 = vmul.f32 %v1359, 1.442695
      %v1382 = vpow.pop %v1381
      %v1383 = vmul.f32 %v1360, 1.442695
      %v1384 = vpow.pop %v1383
      %v1385 = vmul.f32 %v1361, 1.442695
      %v1386 = vpow.pop %v1385
      %v1387 = vmul.f32 %v1362, 1.442695
      %v1388 = vpow.pop %v1387
      %v1389 = vmul.f32 %v1363, 1.442695
      %v1390 = vpow.pop %v1389
      %v1391 = vmul.f32 %v1364, 1.442695
      %v1392 = vpow.pop %v1391
      %v1393 = vmul.f32 %v1365, 1.442695
      %v1394 = vpow.pop %v1393
      %v1395 = vmul.f32 %v1366, 1.442695
      %v1396 = vpow.pop %v1395
      %v1397 = vmul.f32 %v1367, 1.442695
      %v1398 = vpow.pop %v1397
      %v1399 = vmul.f32 %v1368, 1.442695
      %v1400 = vpow.pop %v1399
      %v1401 = vld [vmem:[#allocation4] sm:$0xff]
      %v1402 = vld [vmem:[#allocation4 + $0x8] sm:$0xff]
      %v1403 = vld [vmem:[#allocation4 + $0x10] sm:$0xff]
      %v1404 = vld [vmem:[#allocation4 + $0x18] sm:$0xff]
      %v1405 = vld [vmem:[#allocation4 + $0x20] sm:$0xff]
      %v1406 = vld [vmem:[#allocation4 + $0x28] sm:$0xff]
      %v1407 = vld [vmem:[#allocation4 + $0x30] sm:$0xff]
      %v1408 = vld [vmem:[#allocation4 + $0x38] sm:$0xff]
      %v1409 = vld [vmem:[#allocation4 + $0x40] sm:$0xff]
      %v1410 = vld [vmem:[#allocation4 + $0x48] sm:$0xff]
      %v1411 = vld [vmem:[#allocation4 + $0x50] sm:$0xff]
      %v1412 = vld [vmem:[#allocation4 + $0x58] sm:$0xff]
      %v1413 = vld [vmem:[#allocation4 + $0x60] sm:$0xff]
      %v1414 = vld [vmem:[#allocation4 + $0x68] sm:$0xff]
      %v1415 = vld [vmem:[#allocation4 + $0x70] sm:$0xff]
      %v1416 = vld [vmem:[#allocation4 + $0x78] sm:$0xff]
      %v1417 = vmul.f32 %v1242, %v1401
      %v1418 = vmul.f32 %v1244, %v1402
      %v1419 = vmul.f32 %v1246, %v1403
      %v1420 = vmul.f32 %v1248, %v1404
      %v1421 = vmul.f32 %v1250, %v1405
      %v1422 = vmul.f32 %v1252, %v1406
      %v1423 = vmul.f32 %v1254, %v1407
      %v1424 = vmul.f32 %v1256, %v1408
      %v1425 = vmul.f32 %v1258, %v1409
      %v1426 = vmul.f32 %v1260, %v1410
      %v1427 = vmul.f32 %v1262, %v1411
      %v1428 = vmul.f32 %v1264, %v1412
      %v1429 = vmul.f32 %v1266, %v1413
      %v1430 = vmul.f32 %v1268, %v1414
      %v1431 = vmul.f32 %v1270, %v1415
      %v1432 = vmul.f32 %v1272, %v1416
      %1433 = vadd.xlane.f32.xlu0 %v1370
      %v1434 = vpop.xlane.xlu0 %1433
      %1435 = vadd.xlane.f32.xlu0 %v1372
      %v1436 = vpop.xlane.xlu0 %1435
      %1437 = vadd.xlane.f32.xlu0 %v1374
      %v1438 = vpop.xlane.xlu0 %1437
      %1439 = vadd.xlane.f32.xlu0 %v1376
      %v1440 = vpop.xlane.xlu0 %1439
      %1441 = vadd.xlane.f32.xlu0 %v1378
      %v1442 = vpop.xlane.xlu0 %1441
      %1443 = vadd.xlane.f32.xlu0 %v1380
      %v1444 = vpop.xlane.xlu0 %1443
      %1445 = vadd.xlane.f32.xlu0 %v1382
      %v1446 = vpop.xlane.xlu0 %1445
      %1447 = vadd.xlane.f32.xlu0 %v1384
      %v1448 = vpop.xlane.xlu0 %1447
      %1449 = vadd.xlane.f32.xlu0 %v1386
      %v1450 = vpop.xlane.xlu0 %1449
      %1451 = vadd.xlane.f32.xlu0 %v1388
      %v1452 = vpop.xlane.xlu0 %1451
      %1453 = vadd.xlane.f32.xlu0 %v1390
      %v1454 = vpop.xlane.xlu0 %1453
      %1455 = vadd.xlane.f32.xlu0 %v1392
      %v1456 = vpop.xlane.xlu0 %1455
      %1457 = vadd.xlane.f32.xlu0 %v1394
      %v1458 = vpop.xlane.xlu0 %1457
      %1459 = vadd.xlane.f32.xlu0 %v1396
      %v1460 = vpop.xlane.xlu0 %1459
      %1461 = vadd.xlane.f32.xlu0 %v1398
      %v1462 = vpop.xlane.xlu0 %1461
      %1463 = vadd.xlane.f32.xlu0 %v1400
      %v1464 = vpop.xlane.xlu0 %1463
      %v1465 = vadd.f32 %v1417, %v1434
      %v1466 = vadd.f32 %v1418, %v1436
      %v1467 = vadd.f32 %v1419, %v1438
      %v1468 = vadd.f32 %v1420, %v1440
      %v1469 = vadd.f32 %v1421, %v1442
      %v1470 = vadd.f32 %v1422, %v1444
      %v1471 = vadd.f32 %v1423, %v1446
      %v1472 = vadd.f32 %v1424, %v1448
      %v1473 = vadd.f32 %v1425, %v1450
      %v1474 = vadd.f32 %v1426, %v1452
      %v1475 = vadd.f32 %v1427, %v1454
      %v1476 = vadd.f32 %v1428, %v1456
      %v1477 = vadd.f32 %v1429, %v1458
      %v1478 = vadd.f32 %v1430, %v1460
      %v1479 = vadd.f32 %v1431, %v1462
      %v1480 = vadd.f32 %v1432, %v1464
      %vm1481 = vcmask 7168
      %1482 = vst.msk [vmem:[#allocation4] sm:$0xff] %vm1481, %v1465
      %1483 = vst.msk [vmem:[#allocation4 + $0x8] sm:$0xff] %vm1481, %v1466
      %1484 = vst.msk [vmem:[#allocation4 + $0x10] sm:$0xff] %vm1481, %v1467
      %1485 = vst.msk [vmem:[#allocation4 + $0x18] sm:$0xff] %vm1481, %v1468
      %1486 = vst.msk [vmem:[#allocation4 + $0x20] sm:$0xff] %vm1481, %v1469
      %1487 = vst.msk [vmem:[#allocation4 + $0x28] sm:$0xff] %vm1481, %v1470
      %1488 = vst.msk [vmem:[#allocation4 + $0x30] sm:$0xff] %vm1481, %v1471
      %1489 = vst.msk [vmem:[#allocation4 + $0x38] sm:$0xff] %vm1481, %v1472
      %1490 = vst.msk [vmem:[#allocation4 + $0x40] sm:$0xff] %vm1481, %v1473
      %1491 = vst.msk [vmem:[#allocation4 + $0x48] sm:$0xff] %vm1481, %v1474
      %1492 = vst.msk [vmem:[#allocation4 + $0x50] sm:$0xff] %vm1481, %v1475
      %1493 = vst.msk [vmem:[#allocation4 + $0x58] sm:$0xff] %vm1481, %v1476
      %1494 = vst.msk [vmem:[#allocation4 + $0x60] sm:$0xff] %vm1481, %v1477
      %1495 = vst.msk [vmem:[#allocation4 + $0x68] sm:$0xff] %vm1481, %v1478
      %1496 = vst.msk [vmem:[#allocation4 + $0x70] sm:$0xff] %vm1481, %v1479
      %1497 = vst.msk [vmem:[#allocation4 + $0x78] sm:$0xff] %vm1481, %v1480
      %v1498 = vld [vmem:[#allocation5] sm:$0xff]
      %v1499 = vld [vmem:[#allocation5 + $0x8] sm:$0xff]
      %v1500 = vld [vmem:[#allocation5 + $0x10] sm:$0xff]
      %v1501 = vld [vmem:[#allocation5 + $0x18] sm:$0xff]
      %v1502 = vld [vmem:[#allocation5 + $0x20] sm:$0xff]
      %v1503 = vld [vmem:[#allocation5 + $0x28] sm:$0xff]
      %v1504 = vld [vmem:[#allocation5 + $0x30] sm:$0xff]
      %v1505 = vld [vmem:[#allocation5 + $0x38] sm:$0xff]
      %v1506 = vld [vmem:[#allocation5 + $0x40] sm:$0xff]
      %v1507 = vld [vmem:[#allocation5 + $0x48] sm:$0xff]
      %v1508 = vld [vmem:[#allocation5 + $0x50] sm:$0xff]
      %v1509 = vld [vmem:[#allocation5 + $0x58] sm:$0xff]
      %v1510 = vld [vmem:[#allocation5 + $0x60] sm:$0xff]
      %v1511 = vld [vmem:[#allocation5 + $0x68] sm:$0xff]
      %v1512 = vld [vmem:[#allocation5 + $0x70] sm:$0xff]
      %v1513 = vld [vmem:[#allocation5 + $0x78] sm:$0xff]
      %1515 = vset.pattern.permute.xlu0 0
      %1516 = vperm.xlu0 %1515, %v1242
      %v1517 = vpop.permute.xlu0 %1516
      %1520 = vset.pattern.permute.xlu0 0
      %1521 = vperm.xlu0 %1520, %v1244
      %v1522 = vpop.permute.xlu0 %1521
      %1525 = vset.pattern.permute.xlu0 0
      %1526 = vperm.xlu0 %1525, %v1246
      %v1527 = vpop.permute.xlu0 %1526
      %1530 = vset.pattern.permute.xlu0 0
      %1531 = vperm.xlu0 %1530, %v1248
      %v1532 = vpop.permute.xlu0 %1531
      %1535 = vset.pattern.permute.xlu0 0
      %1536 = vperm.xlu0 %1535, %v1250
      %v1537 = vpop.permute.xlu0 %1536
      %1540 = vset.pattern.permute.xlu0 0
      %1541 = vperm.xlu0 %1540, %v1252
      %v1542 = vpop.permute.xlu0 %1541
      %1545 = vset.pattern.permute.xlu0 0
      %1546 = vperm.xlu0 %1545, %v1254
      %v1547 = vpop.permute.xlu0 %1546
      %1550 = vset.pattern.permute.xlu0 0
      %1551 = vperm.xlu0 %1550, %v1256
      %v1552 = vpop.permute.xlu0 %1551
      %1555 = vset.pattern.permute.xlu0 0
      %1556 = vperm.xlu0 %1555, %v1258
      %v1557 = vpop.permute.xlu0 %1556
      %1560 = vset.pattern.permute.xlu0 0
      %1561 = vperm.xlu0 %1560, %v1260
      %v1562 = vpop.permute.xlu0 %1561
      %1565 = vset.pattern.permute.xlu0 0
      %1566 = vperm.xlu0 %1565, %v1262
      %v1567 = vpop.permute.xlu0 %1566
      %1570 = vset.pattern.permute.xlu0 0
      %1571 = vperm.xlu0 %1570, %v1264
      %v1572 = vpop.permute.xlu0 %1571
      %1575 = vset.pattern.permute.xlu0 0
      %1576 = vperm.xlu0 %1575, %v1266
      %v1577 = vpop.permute.xlu0 %1576
      %1580 = vset.pattern.permute.xlu0 0
      %1581 = vperm.xlu0 %1580, %v1268
      %v1582 = vpop.permute.xlu0 %1581
      %1585 = vset.pattern.permute.xlu0 0
      %1586 = vperm.xlu0 %1585, %v1270
      %v1587 = vpop.permute.xlu0 %1586
      %1590 = vset.pattern.permute.xlu0 0
      %1591 = vperm.xlu0 %1590, %v1272
      %v1592 = vpop.permute.xlu0 %1591
      %v1594 = vmul.f32 %v1517, %v1498
      %v1595 = vmul.f32 %v1522, %v1499
      %v1596 = vmul.f32 %v1527, %v1500
      %v1597 = vmul.f32 %v1532, %v1501
      %v1598 = vmul.f32 %v1537, %v1502
      %v1599 = vmul.f32 %v1542, %v1503
      %v1600 = vmul.f32 %v1547, %v1504
      %v1601 = vmul.f32 %v1552, %v1505
      %v1602 = vmul.f32 %v1557, %v1506
      %v1603 = vmul.f32 %v1562, %v1507
      %v1604 = vmul.f32 %v1567, %v1508
      %v1605 = vmul.f32 %v1572, %v1509
      %v1606 = vmul.f32 %v1577, %v1510
      %v1607 = vmul.f32 %v1582, %v1511
      %v1608 = vmul.f32 %v1587, %v1512
      %v1609 = vmul.f32 %v1592, %v1513
      %v1610 = vpack.c.bf16 %v1372, %v1370
      %v1611 = vpack.c.bf16 %v1376, %v1374
      %v1612 = vpack.c.bf16 %v1380, %v1378
      %v1613 = vpack.c.bf16 %v1384, %v1382
      %v1614 = vpack.c.bf16 %v1388, %v1386
      %v1615 = vpack.c.bf16 %v1392, %v1390
      %v1616 = vpack.c.bf16 %v1396, %v1394
      %v1617 = vpack.c.bf16 %v1400, %v1398
      %1626 = vrot.lane.b32.xlu0 %v1000, 64
      %v1627 = vpop.permute.xlu0 %1626
      %1628 = vrot.lane.b32.xlu0 %v1001, 64
      %v1629 = vpop.permute.xlu0 %1628
      %1630 = vrot.lane.b32.xlu0 %v1002, 64
      %v1631 = vpop.permute.xlu0 %1630
      %1632 = vrot.lane.b32.xlu0 %v1003, 64
      %v1633 = vpop.permute.xlu0 %1632
      %1634 = vrot.lane.b32.xlu0 %v1004, 64
      %v1635 = vpop.permute.xlu0 %1634
      %1636 = vrot.lane.b32.xlu0 %v1005, 64
      %v1637 = vpop.permute.xlu0 %1636
      %1638 = vrot.lane.b32.xlu0 %v1006, 64
      %v1639 = vpop.permute.xlu0 %1638
      %1640 = vrot.lane.b32.xlu0 %v1007, 64
      %v1641 = vpop.permute.xlu0 %1640
      %1650 = vmatprep.subr.bf16.mxu0 0
      %1651 = vmatpush1.bf16.msra.mxu0 %v1627
      %1652 = vmatprep.subr.bf16.mxu0 0
      %1653 = vmatpush1.bf16.msra.mxu0 %v1629
      %1654 = vmatprep.subr.bf16.mxu0 0
      %1655 = vmatpush1.bf16.msra.mxu0 %v1631
      %1656 = vmatprep.subr.bf16.mxu0 0
      %1657 = vmatpush1.bf16.msra.mxu0 %v1633
      %1658 = vmatprep.subr.bf16.mxu0 0
      %1659 = vmatpush1.bf16.msra.mxu0 %v1635
      %1660 = vmatprep.subr.bf16.mxu0 0
      %1661 = vmatpush1.bf16.msra.mxu0 %v1637
      %1662 = vmatprep.subr.bf16.mxu0 0
      %1663 = vmatpush1.bf16.msra.mxu0 %v1639
      %1664 = vmatprep.subr.bf16.mxu0 0
      %1665 = vmatpush1.bf16.msra.mxu0 %v1641
      %1666 = vmatprep.subr.bf16.mxu0 0
      %1667 = vmatpush1.bf16.msra.mxu0 0
      %1668 = vmatprep.subr.bf16.mxu0 0
      %1669 = vmatpush1.bf16.msra.mxu0 0
      %1670 = vmatprep.subr.bf16.mxu0 0
      %1671 = vmatpush1.bf16.msra.mxu0 0
      %1672 = vmatprep.subr.bf16.mxu0 0
      %1673 = vmatpush1.bf16.msra.mxu0 0
      %1674 = vmatprep.subr.bf16.mxu0 0
      %1675 = vmatpush1.bf16.msra.mxu0 0
      %1676 = vmatprep.subr.bf16.mxu0 0
      %1677 = vmatpush1.bf16.msra.mxu0 0
      %1678 = vmatprep.subr.bf16.mxu0 0
      %1679 = vmatpush1.bf16.msra.mxu0 0
      %1680 = vmatprep.subr.bf16.mxu0 0
      %1681 = vmatpush1.bf16.msra.mxu0 0
      %1682 = vmatprep.mubr.bf16.mxu0 0
      %1683 = vmatmul.mubr.bf16.gmra.mrb[0].mxu0 %v1610
      %v1684 = vpop.f32.mrb[0].mxu0
      %v1685 = vadd.f32 0.0, %v1684
      %v1686 = vpop.f32.mrb[0].mxu0
      %v1687 = vpop.f32.mrb[0].mxu0
      %v1688 = vadd.f32 0.0, %v1687
      %v1689 = vpop.f32.mrb[0].mxu0
      %1690 = vmatprep.mubr.bf16.mxu0 0
      %1691 = vmatmul.mubr.bf16.gmra.mrb[0].mxu0 %v1611
      %v1692 = vpop.f32.mrb[0].mxu0
      %v1693 = vadd.f32 0.0, %v1692
      %v1694 = vpop.f32.mrb[0].mxu0
      %v1695 = vpop.f32.mrb[0].mxu0
      %v1696 = vadd.f32 0.0, %v1695
      %v1697 = vpop.f32.mrb[0].mxu0
      %1698 = vmatprep.mubr.bf16.mxu0 0
      %1699 = vmatmul.mubr.bf16.gmra.mrb[0].mxu0 %v1612
      %v1700 = vpop.f32.mrb[0].mxu0
      %v1701 = vadd.f32 0.0, %v1700
      %v1702 = vpop.f32.mrb[0].mxu0
      %v1703 = vpop.f32.mrb[0].mxu0
      %v1704 = vadd.f32 0.0, %v1703
      %v1705 = vpop.f32.mrb[0].mxu0
      %1706 = vmatprep.mubr.bf16.mxu0 0
      %1707 = vmatmul.mubr.bf16.gmra.mrb[0].mxu0 %v1613
      %v1708 = vpop.f32.mrb[0].mxu0
      %v1709 = vadd.f32 0.0, %v1708
      %v1710 = vpop.f32.mrb[0].mxu0
      %v1711 = vpop.f32.mrb[0].mxu0
      %v1712 = vadd.f32 0.0, %v1711
      %v1713 = vpop.f32.mrb[0].mxu0
      %1714 = vmatprep.mubr.bf16.mxu0 0
      %1715 = vmatmul.mubr.bf16.gmra.mrb[0].mxu0 %v1614
      %v1716 = vpop.f32.mrb[0].mxu0
      %v1717 = vadd.f32 0.0, %v1716
      %v1718 = vpop.f32.mrb[0].mxu0
      %v1719 = vpop.f32.mrb[0].mxu0
      %v1720 = vadd.f32 0.0, %v1719
      %v1721 = vpop.f32.mrb[0].mxu0
      %1722 = vmatprep.mubr.bf16.mxu0 0
      %1723 = vmatmul.mubr.bf16.gmra.mrb[0].mxu0 %v1615
      %v1724 = vpop.f32.mrb[0].mxu0
      %v1725 = vadd.f32 0.0, %v1724
      %v1726 = vpop.f32.mrb[0].mxu0
      %v1727 = vpop.f32.mrb[0].mxu0
      %v1728 = vadd.f32 0.0, %v1727
      %v1729 = vpop.f32.mrb[0].mxu0
      %1730 = vmatprep.mubr.bf16.mxu0 0
      %1731 = vmatmul.mubr.bf16.gmra.mrb[0].mxu0 %v1616
      %v1732 = vpop.f32.mrb[0].mxu0
      %v1733 = vadd.f32 0.0, %v1732
      %v1734 = vpop.f32.mrb[0].mxu0
      %v1735 = vpop.f32.mrb[0].mxu0
      %v1736 = vadd.f32 0.0, %v1735
      %v1737 = vpop.f32.mrb[0].mxu0
      %1738 = vmatprep.mubr.bf16.mxu0 0
      %1739 = vmatmul.mubr.bf16.gmra.mrb[0].mxu0 %v1617
      %v1740 = vpop.f32.mrb[0].mxu0
      %v1741 = vadd.f32 0.0, %v1740
      %v1742 = vpop.f32.mrb[0].mxu0
      %v1743 = vpop.f32.mrb[0].mxu0
      %v1744 = vadd.f32 0.0, %v1743
      %v1745 = vpop.f32.mrb[0].mxu0
      %1746 = vdwg.mxu0
      %v1747 = vadd.f32 %v1594, %v1685
      %v1748 = vadd.f32 %v1595, %v1688
      %v1749 = vadd.f32 %v1596, %v1693
      %v1750 = vadd.f32 %v1597, %v1696
      %v1751 = vadd.f32 %v1598, %v1701
      %v1752 = vadd.f32 %v1599, %v1704
      %v1753 = vadd.f32 %v1600, %v1709
      %v1754 = vadd.f32 %v1601, %v1712
      %v1755 = vadd.f32 %v1602, %v1717
      %v1756 = vadd.f32 %v1603, %v1720
      %v1757 = vadd.f32 %v1604, %v1725
      %v1758 = vadd.f32 %v1605, %v1728
      %v1759 = vadd.f32 %v1606, %v1733
      %v1760 = vadd.f32 %v1607, %v1736
      %v1761 = vadd.f32 %v1608, %v1741
      %v1762 = vadd.f32 %v1609, %v1744
      %1763 = vst.msk [vmem:[#allocation5] sm:$0xff] %vm878, %v1747
      %1764 = vst.msk [vmem:[#allocation5 + $0x8] sm:$0xff] %vm878, %v1748
      %1765 = vst.msk [vmem:[#allocation5 + $0x10] sm:$0xff] %vm878, %v1749
      %1766 = vst.msk [vmem:[#allocation5 + $0x18] sm:$0xff] %vm878, %v1750
      %1767 = vst.msk [vmem:[#allocation5 + $0x20] sm:$0xff] %vm878, %v1751
      %1768 = vst.msk [vmem:[#allocation5 + $0x28] sm:$0xff] %vm878, %v1752
      %1769 = vst.msk [vmem:[#allocation5 + $0x30] sm:$0xff] %vm878, %v1753
      %1770 = vst.msk [vmem:[#allocation5 + $0x38] sm:$0xff] %vm878, %v1754
      %1771 = vst.msk [vmem:[#allocation5 + $0x40] sm:$0xff] %vm878, %v1755
      %1772 = vst.msk [vmem:[#allocation5 + $0x48] sm:$0xff] %vm878, %v1756
      %1773 = vst.msk [vmem:[#allocation5 + $0x50] sm:$0xff] %vm878, %v1757
      %1774 = vst.msk [vmem:[#allocation5 + $0x58] sm:$0xff] %vm878, %v1758
      %1775 = vst.msk [vmem:[#allocation5 + $0x60] sm:$0xff] %vm878, %v1759
      %1776 = vst.msk [vmem:[#allocation5 + $0x68] sm:$0xff] %vm878, %v1760
      %1777 = vst.msk [vmem:[#allocation5 + $0x70] sm:$0xff] %vm878, %v1761
      %1778 = vst.msk [vmem:[#allocation5 + $0x78] sm:$0xff] %vm878, %v1762
      %1779 = vst.msk [vmem:[#allocation3] sm:$0xff] %vm1481, %v1209
      %1780 = vst.msk [vmem:[#allocation3 + $0x8] sm:$0xff] %vm1481, %v1210
      %1781 = vst.msk [vmem:[#allocation3 + $0x10] sm:$0xff] %vm1481, %v1211
      %1782 = vst.msk [vmem:[#allocation3 + $0x18] sm:$0xff] %vm1481, %v1212
      %1783 = vst.msk [vmem:[#allocation3 + $0x20] sm:$0xff] %vm1481, %v1213
      %1784 = vst.msk [vmem:[#allocation3 + $0x28] sm:$0xff] %vm1481, %v1214
      %1785 = vst.msk [vmem:[#allocation3 + $0x30] sm:$0xff] %vm1481, %v1215
      %1786 = vst.msk [vmem:[#allocation3 + $0x38] sm:$0xff] %vm1481, %v1216
      %1787 = vst.msk [vmem:[#allocation3 + $0x40] sm:$0xff] %vm1481, %v1217
      %1788 = vst.msk [vmem:[#allocation3 + $0x48] sm:$0xff] %vm1481, %v1218
      %1789 = vst.msk [vmem:[#allocation3 + $0x50] sm:$0xff] %vm1481, %v1219
      %1790 = vst.msk [vmem:[#allocation3 + $0x58] sm:$0xff] %vm1481, %v1220
      %1791 = vst.msk [vmem:[#allocation3 + $0x60] sm:$0xff] %vm1481, %v1221
      %1792 = vst.msk [vmem:[#allocation3 + $0x68] sm:$0xff] %vm1481, %v1222
      %1793 = vst.msk [vmem:[#allocation3 + $0x70] sm:$0xff] %vm1481, %v1223
      %1794 = vst.msk [vmem:[#allocation3 + $0x78] sm:$0xff] %vm1481, %v1224
      %p1795 = scmp.eq.s32.totalorder %s28, 1
      // Predicated region
      $region65: #{tpu_custom_call.1} parent=59 // pred_check
        %p1796 = pneg %p1795
      $region66: #{tpu_custom_call.1} parent=59 // pred_check_branch
        %1798 = sbr.rel (%p1796) target = $region68
      $region67: #{tpu_custom_call.1} parent=59 // pred_region
        %v1799 = vld [vmem:[#allocation5] sm:$0xff]
        %v1800 = vld [vmem:[#allocation5 + $0x8] sm:$0xff]
        %v1801 = vld [vmem:[#allocation5 + $0x10] sm:$0xff]
        %v1802 = vld [vmem:[#allocation5 + $0x18] sm:$0xff]
        %v1803 = vld [vmem:[#allocation5 + $0x20] sm:$0xff]
        %v1804 = vld [vmem:[#allocation5 + $0x28] sm:$0xff]
        %v1805 = vld [vmem:[#allocation5 + $0x30] sm:$0xff]
        %v1806 = vld [vmem:[#allocation5 + $0x38] sm:$0xff]
        %v1807 = vld [vmem:[#allocation5 + $0x40] sm:$0xff]
        %v1808 = vld [vmem:[#allocation5 + $0x48] sm:$0xff]
        %v1809 = vld [vmem:[#allocation5 + $0x50] sm:$0xff]
        %v1810 = vld [vmem:[#allocation5 + $0x58] sm:$0xff]
        %v1811 = vld [vmem:[#allocation5 + $0x60] sm:$0xff]
        %v1812 = vld [vmem:[#allocation5 + $0x68] sm:$0xff]
        %v1813 = vld [vmem:[#allocation5 + $0x70] sm:$0xff]
        %v1814 = vld [vmem:[#allocation5 + $0x78] sm:$0xff]
        %v1815 = vld [vmem:[#allocation4] sm:$0xff]
        %v1816 = vld [vmem:[#allocation4 + $0x8] sm:$0xff]
        %v1817 = vld [vmem:[#allocation4 + $0x10] sm:$0xff]
        %v1818 = vld [vmem:[#allocation4 + $0x18] sm:$0xff]
        %v1819 = vld [vmem:[#allocation4 + $0x20] sm:$0xff]
        %v1820 = vld [vmem:[#allocation4 + $0x28] sm:$0xff]
        %v1821 = vld [vmem:[#allocation4 + $0x30] sm:$0xff]
        %v1822 = vld [vmem:[#allocation4 + $0x38] sm:$0xff]
        %v1823 = vld [vmem:[#allocation4 + $0x40] sm:$0xff]
        %v1824 = vld [vmem:[#allocation4 + $0x48] sm:$0xff]
        %v1825 = vld [vmem:[#allocation4 + $0x50] sm:$0xff]
        %v1826 = vld [vmem:[#allocation4 + $0x58] sm:$0xff]
        %v1827 = vld [vmem:[#allocation4 + $0x60] sm:$0xff]
        %v1828 = vld [vmem:[#allocation4 + $0x68] sm:$0xff]
        %v1829 = vld [vmem:[#allocation4 + $0x70] sm:$0xff]
        %v1830 = vld [vmem:[#allocation4 + $0x78] sm:$0xff]
        %v1831 = vrcp.pop %v1815
        %v1832 = vrcp.pop %v1816
        %v1833 = vrcp.pop %v1817
        %v1834 = vrcp.pop %v1818
        %v1835 = vrcp.pop %v1819
        %v1836 = vrcp.pop %v1820
        %v1837 = vrcp.pop %v1821
        %v1838 = vrcp.pop %v1822
        %v1839 = vrcp.pop %v1823
        %v1840 = vrcp.pop %v1824
        %v1841 = vrcp.pop %v1825
        %v1842 = vrcp.pop %v1826
        %v1843 = vrcp.pop %v1827
        %v1844 = vrcp.pop %v1828
        %v1845 = vrcp.pop %v1829
        %v1846 = vrcp.pop %v1830
        %1848 = vset.pattern.permute.xlu0 0
        %1849 = vperm.xlu0 %1848, %v1831
        %v1850 = vpop.permute.xlu0 %1849
        %1853 = vset.pattern.permute.xlu0 0
        %1854 = vperm.xlu0 %1853, %v1832
        %v1855 = vpop.permute.xlu0 %1854
        %1858 = vset.pattern.permute.xlu0 0
        %1859 = vperm.xlu0 %1858, %v1833
        %v1860 = vpop.permute.xlu0 %1859
        %1863 = vset.pattern.permute.xlu0 0
        %1864 = vperm.xlu0 %1863, %v1834
        %v1865 = vpop.permute.xlu0 %1864
        %1868 = vset.pattern.permute.xlu0 0
        %1869 = vperm.xlu0 %1868, %v1835
        %v1870 = vpop.permute.xlu0 %1869
        %1873 = vset.pattern.permute.xlu0 0
        %1874 = vperm.xlu0 %1873, %v1836
        %v1875 = vpop.permute.xlu0 %1874
        %1878 = vset.pattern.permute.xlu0 0
        %1879 = vperm.xlu0 %1878, %v1837
        %v1880 = vpop.permute.xlu0 %1879
        %1883 = vset.pattern.permute.xlu0 0
        %1884 = vperm.xlu0 %1883, %v1838
        %v1885 = vpop.permute.xlu0 %1884
        %1888 = vset.pattern.permute.xlu0 0
        %1889 = vperm.xlu0 %1888, %v1839
        %v1890 = vpop.permute.xlu0 %1889
        %1893 = vset.pattern.permute.xlu0 0
        %1894 = vperm.xlu0 %1893, %v1840
        %v1895 = vpop.permute.xlu0 %1894
        %1898 = vset.pattern.permute.xlu0 0
        %1899 = vperm.xlu0 %1898, %v1841
        %v1900 = vpop.permute.xlu0 %1899
        %1903 = vset.pattern.permute.xlu0 0
        %1904 = vperm.xlu0 %1903, %v1842
        %v1905 = vpop.permute.xlu0 %1904
        %1908 = vset.pattern.permute.xlu0 0
        %1909 = vperm.xlu0 %1908, %v1843
        %v1910 = vpop.permute.xlu0 %1909
        %1913 = vset.pattern.permute.xlu0 0
        %1914 = vperm.xlu0 %1913, %v1844
        %v1915 = vpop.permute.xlu0 %1914
        %1918 = vset.pattern.permute.xlu0 0
        %1919 = vperm.xlu0 %1918, %v1845
        %v1920 = vpop.permute.xlu0 %1919
        %1923 = vset.pattern.permute.xlu0 0
        %1924 = vperm.xlu0 %1923, %v1846
        %v1925 = vpop.permute.xlu0 %1924
        %v1927 = vmul.f32 %v1799, %v1850
        %v1928 = vmul.f32 %v1800, %v1855
        %v1929 = vmul.f32 %v1801, %v1860
        %v1930 = vmul.f32 %v1802, %v1865
        %v1931 = vmul.f32 %v1803, %v1870
        %v1932 = vmul.f32 %v1804, %v1875
        %v1933 = vmul.f32 %v1805, %v1880
        %v1934 = vmul.f32 %v1806, %v1885
        %v1935 = vmul.f32 %v1807, %v1890
        %v1936 = vmul.f32 %v1808, %v1895
        %v1937 = vmul.f32 %v1809, %v1900
        %v1938 = vmul.f32 %v1810, %v1905
        %v1939 = vmul.f32 %v1811, %v1910
        %v1940 = vmul.f32 %v1812, %v1915
        %v1941 = vmul.f32 %v1813, %v1920
        %v1942 = vmul.f32 %v1814, %v1925
        %v1943 = vpack.c.bf16 %v1928, %v1927
        %v1944 = vpack.c.bf16 %v1930, %v1929
        %v1945 = vpack.c.bf16 %v1932, %v1931
        %v1946 = vpack.c.bf16 %v1934, %v1933
        %v1947 = vpack.c.bf16 %v1936, %v1935
        %v1948 = vpack.c.bf16 %v1938, %v1937
        %v1949 = vpack.c.bf16 %v1940, %v1939
        %v1950 = vpack.c.bf16 %v1942, %v1941
        %v1951 = vld [vmem:[%s8] sm:$0xf]
        %v1952 = vld [vmem:[%s8 + $0x4] sm:$0xf]
        %v1953 = vld [vmem:[%s8 + $0x8] sm:$0xf]
        %v1954 = vld [vmem:[%s8 + $0xc] sm:$0xf]
        %v1955 = vld [vmem:[%s8 + $0x10] sm:$0xf]
        %v1956 = vld [vmem:[%s8 + $0x14] sm:$0xf]
        %v1957 = vld [vmem:[%s8 + $0x18] sm:$0xf]
        %v1958 = vld [vmem:[%s8 + $0x1c] sm:$0xf]
        %v1959 = vld [vmem:[%s9] sm:$0x1]
        %v1961 = vlaneseq
        %v1962 = vshrl.u32 %v1961, 7
        %v1963 = vsub.s32 0, %v1962
        %v1964 = vrot.slane %v1959, %v1963
        %v1974 = vunpack.c.l.b16 %v1951
        %v1975 = vunpack.c.l.b16 %v1952
        %v1976 = vunpack.c.l.b16 %v1953
        %v1977 = vunpack.c.l.b16 %v1954
        %v1978 = vunpack.c.l.b16 %v1955
        %v1979 = vunpack.c.l.b16 %v1956
        %v1980 = vunpack.c.l.b16 %v1957
        %v1981 = vunpack.c.l.b16 %v1958
        %v1982 = vpack.c.b16 %v1975, %v1974
        %v1983 = vpack.c.b16 %v1977, %v1976
        %v1984 = vpack.c.b16 %v1979, %v1978
        %v1985 = vpack.c.b16 %v1981, %v1980
        %v1991 = vsel %vm878, %v1943, 0
        %v1994 = vsel %vm878, %v1944, 0
        %v1997 = vsel %vm878, %v1945, 0
        %v2000 = vsel %vm878, %v1946, 0
        %v2003 = vsel %vm878, %v1947, 0
        %v2006 = vsel %vm878, %v1948, 0
        %v2009 = vsel %vm878, %v1949, 0
        %v2012 = vsel %vm878, %v1950, 0
        %2014 = vmatprep.subr.bf16.mxu0 0
        %2015 = vmatpush1.bf16.msra.mxu0 %v1982
        %2016 = vmatprep.subr.bf16.mxu0 0
        %2017 = vmatpush1.bf16.msra.mxu0 %v1983
        %2018 = vmatprep.subr.bf16.mxu0 0
        %2019 = vmatpush1.bf16.msra.mxu0 %v1984
        %2020 = vmatprep.subr.bf16.mxu0 0
        %2021 = vmatpush1.bf16.msra.mxu0 %v1985
        %2022 = vmatprep.subr.bf16.mxu0 0
        %2023 = vmatpush1.bf16.msra.mxu0 0
        %2024 = vmatprep.subr.bf16.mxu0 0
        %2025 = vmatpush1.bf16.msra.mxu0 0
        %2026 = vmatprep.subr.bf16.mxu0 0
        %2027 = vmatpush1.bf16.msra.mxu0 0
        %2028 = vmatprep.subr.bf16.mxu0 0
        %2029 = vmatpush1.bf16.msra.mxu0 0
        %2030 = vmatprep.subr.bf16.mxu0 0
        %2031 = vmatpush1.bf16.msra.mxu0 0
        %2032 = vmatprep.subr.bf16.mxu0 0
        %2033 = vmatpush1.bf16.msra.mxu0 0
        %2034 = vmatprep.subr.bf16.mxu0 0
        %2035 = vmatpush1.bf16.msra.mxu0 0
        %2036 = vmatprep.subr.bf16.mxu0 0
        %2037 = vmatpush1.bf16.msra.mxu0 0
        %2038 = vmatprep.subr.bf16.mxu0 0
        %2039 = vmatpush1.bf16.msra.mxu0 0
        %2040 = vmatprep.subr.bf16.mxu0 0
        %2041 = vmatpush1.bf16.msra.mxu0 0
        %2042 = vmatprep.subr.bf16.mxu0 0
        %2043 = vmatpush1.bf16.msra.mxu0 0
        %2044 = vmatprep.subr.bf16.mxu0 0
        %2045 = vmatpush1.bf16.msra.mxu0 0
        %2046 = vmatprep.mubr.bf16.mxu0 0
        %2047 = vmatmul.mubr.bf16.gmra.mrb[0].mxu0 %v1991
        %v2048 = vpop.f32.mrb[0].mxu0
        %v2049 = vadd.f32 %v1964, %v2048
        %v2050 = vpop.f32.mrb[0].mxu0
        %v2051 = vpop.f32.mrb[0].mxu0
        %v2052 = vadd.f32 %v1964, %v2051
        %v2053 = vpop.f32.mrb[0].mxu0
        %2054 = vmatprep.mubr.bf16.mxu0 0
        %2055 = vmatmul.mubr.bf16.gmra.mrb[0].mxu0 %v1994
        %v2056 = vpop.f32.mrb[0].mxu0
        %v2057 = vadd.f32 %v1964, %v2056
        %v2058 = vpop.f32.mrb[0].mxu0
        %v2059 = vpop.f32.mrb[0].mxu0
        %v2060 = vadd.f32 %v1964, %v2059
        %v2061 = vpop.f32.mrb[0].mxu0
        %2062 = vmatprep.mubr.bf16.mxu0 0
        %2063 = vmatmul.mubr.bf16.gmra.mrb[0].mxu0 %v1997
        %v2064 = vpop.f32.mrb[0].mxu0
        %v2065 = vadd.f32 %v1964, %v2064
        %v2066 = vpop.f32.mrb[0].mxu0
        %v2067 = vpop.f32.mrb[0].mxu0
        %v2068 = vadd.f32 %v1964, %v2067
        %v2069 = vpop.f32.mrb[0].mxu0
        %2070 = vmatprep.mubr.bf16.mxu0 0
        %2071 = vmatmul.mubr.bf16.gmra.mrb[0].mxu0 %v2000
        %v2072 = vpop.f32.mrb[0].mxu0
        %v2073 = vadd.f32 %v1964, %v2072
        %v2074 = vpop.f32.mrb[0].mxu0
        %v2075 = vpop.f32.mrb[0].mxu0
        %v2076 = vadd.f32 %v1964, %v2075
        %v2077 = vpop.f32.mrb[0].mxu0
        %2078 = vmatprep.mubr.bf16.mxu0 0
        %2079 = vmatmul.mubr.bf16.gmra.mrb[0].mxu0 %v2003
        %v2080 = vpop.f32.mrb[0].mxu0
        %v2081 = vadd.f32 %v1964, %v2080
        %v2082 = vpop.f32.mrb[0].mxu0
        %v2083 = vpop.f32.mrb[0].mxu0
        %v2084 = vadd.f32 %v1964, %v2083
        %v2085 = vpop.f32.mrb[0].mxu0
        %2086 = vmatprep.mubr.bf16.mxu0 0
        %2087 = vmatmul.mubr.bf16.gmra.mrb[0].mxu0 %v2006
        %v2088 = vpop.f32.mrb[0].mxu0
        %v2089 = vadd.f32 %v1964, %v2088
        %v2090 = vpop.f32.mrb[0].mxu0
        %v2091 = vpop.f32.mrb[0].mxu0
        %v2092 = vadd.f32 %v1964, %v2091
        %v2093 = vpop.f32.mrb[0].mxu0
        %2094 = vmatprep.mubr.bf16.mxu0 0
        %2095 = vmatmul.mubr.bf16.gmra.mrb[0].mxu0 %v2009
        %v2096 = vpop.f32.mrb[0].mxu0
        %v2097 = vadd.f32 %v1964, %v2096
        %v2098 = vpop.f32.mrb[0].mxu0
        %v2099 = vpop.f32.mrb[0].mxu0
        %v2100 = vadd.f32 %v1964, %v2099
        %v2101 = vpop.f32.mrb[0].mxu0
        %2102 = vmatprep.mubr.bf16.mxu0 0
        %2103 = vmatmul.mubr.bf16.gmra.mrb[0].mxu0 %v2012
        %v2104 = vpop.f32.mrb[0].mxu0
        %v2105 = vadd.f32 %v1964, %v2104
        %v2106 = vpop.f32.mrb[0].mxu0
        %v2107 = vpop.f32.mrb[0].mxu0
        %v2108 = vadd.f32 %v1964, %v2107
        %v2109 = vpop.f32.mrb[0].mxu0
        %2110 = vdwg.mxu0
        %v2111 = vld [vmem:[%s442] sm:$0xff]
        %v2112 = vld [vmem:[%s442 + $0x8] sm:$0xff]
        %v2113 = vld [vmem:[%s442 + $0x10] sm:$0xff]
        %v2114 = vld [vmem:[%s442 + $0x18] sm:$0xff]
        %v2115 = vld [vmem:[%s442 + $0x20] sm:$0xff]
        %v2116 = vld [vmem:[%s442 + $0x28] sm:$0xff]
        %v2117 = vld [vmem:[%s442 + $0x30] sm:$0xff]
        %v2118 = vld [vmem:[%s442 + $0x38] sm:$0xff]
        %v2119 = vld [vmem:[%s442 + $0x40] sm:$0xff]
        %v2120 = vld [vmem:[%s442 + $0x48] sm:$0xff]
        %v2121 = vld [vmem:[%s442 + $0x50] sm:$0xff]
        %v2122 = vld [vmem:[%s442 + $0x58] sm:$0xff]
        %v2123 = vld [vmem:[%s442 + $0x60] sm:$0xff]
        %v2124 = vld [vmem:[%s442 + $0x68] sm:$0xff]
        %v2125 = vld [vmem:[%s442 + $0x70] sm:$0xff]
        %v2126 = vld [vmem:[%s442 + $0x78] sm:$0xff]
        %v2127 = vadd.f32 %v2111, %v2049
        %v2128 = vadd.f32 %v2112, %v2052
        %v2129 = vadd.f32 %v2113, %v2057
        %v2130 = vadd.f32 %v2114, %v2060
        %v2131 = vadd.f32 %v2115, %v2065
        %v2132 = vadd.f32 %v2116, %v2068
        %v2133 = vadd.f32 %v2117, %v2073
        %v2134 = vadd.f32 %v2118, %v2076
        %v2135 = vadd.f32 %v2119, %v2081
        %v2136 = vadd.f32 %v2120, %v2084
        %v2137 = vadd.f32 %v2121, %v2089
        %v2138 = vadd.f32 %v2122, %v2092
        %v2139 = vadd.f32 %v2123, %v2097
        %v2140 = vadd.f32 %v2124, %v2100
        %v2141 = vadd.f32 %v2125, %v2105
        %v2142 = vadd.f32 %v2126, %v2108
        %2143 = vst.msk [vmem:[%s468] sm:$0xff] %vm878, %v2127
        %2144 = vst.msk [vmem:[%s468 + $0x8] sm:$0xff] %vm878, %v2128
        %2145 = vst.msk [vmem:[%s468 + $0x10] sm:$0xff] %vm878, %v2129
        %2146 = vst.msk [vmem:[%s468 + $0x18] sm:$0xff] %vm878, %v2130
        %2147 = vst.msk [vmem:[%s468 + $0x20] sm:$0xff] %vm878, %v2131
        %2148 = vst.msk [vmem:[%s468 + $0x28] sm:$0xff] %vm878, %v2132
        %2149 = vst.msk [vmem:[%s468 + $0x30] sm:$0xff] %vm878, %v2133
        %2150 = vst.msk [vmem:[%s468 + $0x38] sm:$0xff] %vm878, %v2134
        %2151 = vst.msk [vmem:[%s468 + $0x40] sm:$0xff] %vm878, %v2135
        %2152 = vst.msk [vmem:[%s468 + $0x48] sm:$0xff] %vm878, %v2136
        %2153 = vst.msk [vmem:[%s468 + $0x50] sm:$0xff] %vm878, %v2137
        %2154 = vst.msk [vmem:[%s468 + $0x58] sm:$0xff] %vm878, %v2138
        %2155 = vst.msk [vmem:[%s468 + $0x60] sm:$0xff] %vm878, %v2139
        %2156 = vst.msk [vmem:[%s468 + $0x68] sm:$0xff] %vm878, %v2140
        %2157 = vst.msk [vmem:[%s468 + $0x70] sm:$0xff] %vm878, %v2141
        %2158 = vst.msk [vmem:[%s468 + $0x78] sm:$0xff] %vm878, %v2142
      $region68: #{tpu_custom_call.1} parent=59 // pred_fallthru
        _
      %s2159 = smul.u32 16, %s27
      %p2160 = scmp.lt.s32.totalorder %s26, 1
      %s2161 = scalar_select %p2160, %s26, 1
      %p2162 = scmp.lt.s32.totalorder %s2159, 31
      %s2163 = scalar_select %p2162, %s2159, 31
      %s2164 = smul.addr %s2161, 32
      %s2165 = sadd.s32 %s2163, %s2164
      %s2166 = smul.addr %s2165, 8
      %s2167 = scalar_lea.vmem %s10, %s2166
      // Predicated region
      $region69: #{tpu_custom_call.1} parent=59 // pred_check
        %p2168 = pneg %p294
      $region70: #{tpu_custom_call.1} parent=59 // pred_check_branch
        %2170 = sbr.rel (%p2168) target = $region72
      $region71: #{tpu_custom_call.1} parent=59 // pred_region
        %s2171 = smul.u32 16, %s27
      $region72: #{tpu_custom_call.1} parent=59 // pred_fallthru
        _
    $region60: #{tpu_custom_call.1} parent=5 // pred_fallthru
      _
    %p2172 = scmp.le.s32.totalorder 2, %s16
    // Predicated region
    $region73: #{tpu_custom_call.1} parent=5 // pred_check
      %p2173 = pneg %p2172
    $region74: #{tpu_custom_call.1} parent=5 // pred_check_branch
      %2175 = sbr.rel (%p2173) target = $region76
    $region75: #{tpu_custom_call.1} parent=5 // pred_region
      %s2176 = ssub.s32 %s16, 2
      // Predicated region
      $region77: #{tpu_custom_call.1} parent=75 // pred_check
        %p2177 = pneg %p300
      $region78: #{tpu_custom_call.1} parent=75 // pred_check_branch
        %2179 = sbr.rel (%p2177) target = $region80
      $region79: #{tpu_custom_call.1} parent=75 // pred_region
        %s2180 = smul.u32 16, %s30
        %p2181 = scmp.lt.s32.totalorder %s29, 1
        %s2182 = scalar_select %p2181, %s29, 1
        %p2183 = scmp.lt.s32.totalorder %s2180, 31
        %s2184 = scalar_select %p2183, %s2180, 31
        %s2185 = smul.addr %s2182, 32
        %s2186 = sadd.s32 %s2184, %s2185
        %s2187 = smul.addr %s2186, 8
        %s2188 = scalar_lea.vmem %s10, %s2187
      $region80: #{tpu_custom_call.1} parent=75 // pred_fallthru
        _
    $region76: #{tpu_custom_call.1} parent=5 // pred_fallthru
      _
  $region6: #{tpu_custom_call.1} parent=0 // loop_footer
    %s20 = sadd.s32 1, %s16
  $region7: #{tpu_custom_call.1} parent=0 // loop_footer_branch
    %15 = sbr.rel target = $region3
  $region8: #{tpu_custom_call.1} parent=0 // loop_exit
    _

</llo_original>
